<compile_context>
chip_gen: v7x
topology: tpu7x:2x2x1
jax: 0.10.0
libtpu: 0.0.40
codegen_flags: <defaults>
</compile_context>

<pallas_src>
import functools

import jax
import jax.numpy as jnp
import numpy as np
from jax import lax
from jax.experimental import pallas as pl
from jax.experimental.pallas import tpu as pltpu


def _round_up(x, m):
    return ((x + m - 1) // m) * m


def _nonlocal_kernel(x_ref, wqkv_ref, bqkv_ref, ww_ref, bw_ref, out_ref,
                     theta_sc, y_sc, *, ic_p, tk):
    """Per-batch non-local block, tiled over the key (column) axis.

    x_ref    : (HW, Cp)     input (padded channels are zero), resident per batch
    wqkv_ref : (Cp, 3*ICp)  fused [theta | g | phi] weights, bf16
    bqkv_ref : (1, 3*ICp)   fused biases, f32
    ww_ref   : (ICp, Cp)    W conv weight, bf16
    bw_ref   : (1, Cp)      W conv bias, f32
    theta_sc : (HW, ICp)    bf16 scratch holding theta_x (all query rows)
    y_sc     : (HW, ICp)    f32 accumulator for y = softmax(f, dim=1) @ g_x
    """
    k = pl.program_id(1)
    nk = pl.num_programs(1)

    # ---- once per batch: theta projection + accumulator init ---------------
    @pl.when(k == 0)
    def _init():
        x_bf = x_ref[...].astype(jnp.bfloat16)
        th = jnp.dot(x_bf, wqkv_ref[:, :ic_p],
                     preferred_element_type=jnp.float32) + bqkv_ref[:, :ic_p]
        theta_sc[...] = th.astype(theta_sc.dtype)
        y_sc[...] = jnp.zeros_like(y_sc)

    # ---- per key tile: g/phi projection -> scores -> column softmax -> y ---
    start = pl.multiple_of(k * tk, tk)
    x_tile = x_ref[pl.ds(start, tk), :].astype(jnp.bfloat16)        # (tk, Cp)

    # Fused [g | phi] projection for this key tile (lane-aligned weight slice).
    gp = jnp.dot(x_tile, wqkv_ref[:, ic_p:],
                 preferred_element_type=jnp.float32) + bqkv_ref[:, ic_p:]
    g_t = gp[:, :ic_p].astype(jnp.bfloat16)                         # (tk, ICp)
    ph_t = gp[:, ic_p:].astype(jnp.bfloat16)                        # (tk, ICp)

    # f_tile = theta_x @ phi_tile^T, contracting last dims (no transpose op).
    f_tile = lax.dot_general(theta_sc[...], ph_t,
                             dimension_numbers=(((1,), (1,)), ((), ())),
                             preferred_element_type=jnp.float32)    # (HW, tk)

    # torch F.softmax(f, dim=1): normalize over the query axis (axis 0 here).
    # Column statistics are complete within a key tile (all HW rows present).
    m = jnp.max(f_tile, axis=0, keepdims=True)
    e = jnp.exp(f_tile - m)
    s = jnp.sum(e, axis=0, keepdims=True)
    p = e * pl.reciprocal(s, approx=True)

    y_sc[...] += jnp.dot(p.astype(jnp.bfloat16), g_t,
                         preferred_element_type=jnp.float32)

    # ---- once per batch: W conv + residual ----------------------------------
    @pl.when(k == nk - 1)
    def _finalize():
        w_y = jnp.dot(y_sc[...].astype(jnp.bfloat16), ww_ref[...],
                      preferred_element_type=jnp.float32) + bw_ref[...]
        out_ref[...] = (w_y + x_ref[...].astype(jnp.float32)).astype(out_ref.dtype)


def nonlocal_block_2d(x_nchw, params, *, tk=None):
    """params: dict with keys g_w (IC,C), g_b (IC,), theta_w, theta_b,
    phi_w, phi_b, W_w (C,IC), W_b (C,)."""
    B, C, H, W = x_nchw.shape
    HW = H * W
    IC = params["g_w"].shape[0]

    # Pad channel axes up to full 128-lane multiples (lane-dense vregs/stores).
    Cp = _round_up(max(C, 128), 128)
    ICp = _round_up(max(IC, 128), 128)

    if tk is None:
        tk = next((c for c in (512, 256, 128) if HW % c == 0), HW)
    assert HW % tk == 0, f"HW={HW} must be divisible by tk={tk}"
    n_kt = HW // tk

    # NCHW -> (B, HW, C) -> zero-pad channels to Cp.
    x_mat = jnp.transpose(x_nchw.reshape(B, C, HW), (0, 2, 1))
    x_mat = jnp.pad(x_mat, ((0, 0), (0, 0), (0, Cp - C)))

    def pad_w(w, rows, cols):   # zero-pad (r,c) -> (rows,cols), cast bf16
        return jnp.pad(w, ((0, rows - w.shape[0]),
                           (0, cols - w.shape[1]))).astype(jnp.bfloat16)

    def pad_b(b, cols):
        return jnp.pad(b.reshape(1, -1),
                       ((0, 0), (0, cols - b.shape[0]))).astype(jnp.float32)

    # Fused [theta | g | phi] projection weights/biases (theta first so the
    # per-tile [g | phi] slice is one contiguous lane-aligned block).
    wqkv = jnp.concatenate([pad_w(params["theta_w"].T, Cp, ICp),
                            pad_w(params["g_w"].T, Cp, ICp),
                            pad_w(params["phi_w"].T, Cp, ICp)], axis=1)
    bqkv = jnp.concatenate([pad_b(params["theta_b"], ICp),
                            pad_b(params["g_b"], ICp),
                            pad_b(params["phi_b"], ICp)], axis=1)
    ww = pad_w(params["W_w"].T, ICp, Cp)
    bw = pad_b(params["W_b"], Cp)

    in_bytes = x_mat.dtype.itemsize
    out_bytes = x_nchw.dtype.itemsize
    weight_bytes = int((wqkv.size + ww.size) * 2 + (bqkv.size + bw.size) * 4)
    vmem_budget = (2 * HW * Cp * in_bytes          # x block (double-buffered)
                   + 2 * HW * Cp * out_bytes       # out block (double-buffered)
                   + 2 * weight_bytes              # weights / biases
                   + HW * ICp * 2                  # theta scratch (bf16)
                   + HW * ICp * 4                  # y accumulator (f32)
                   + tk * 2 * ICp * 4              # per-tile [g|phi] temp
                   + 4 * HW * tk * 4)              # f_tile / exp temporaries
    vmem_limit = int(min(max(2 * vmem_budget, 32 * 2**20), 64 * 2**20))

    cost = pl.CostEstimate(
        flops=int(2 * B * (HW * Cp * 3 * ICp        # fused projections
                           + 2 * HW * HW * ICp      # scores + values
                           + HW * ICp * Cp)),       # W conv
        transcendentals=int(B * HW * HW),
        bytes_accessed=int(B * HW * Cp * (in_bytes + out_bytes) + weight_bytes))

    kernel = functools.partial(_nonlocal_kernel, ic_p=ICp, tk=tk)

    out = pl.pallas_call(
        kernel,
        out_shape=jax.ShapeDtypeStruct((B, HW, Cp), x_nchw.dtype),
        grid_spec=pltpu.PrefetchScalarGridSpec(
            num_scalar_prefetch=0,
            grid=(B, n_kt),
            in_specs=[
                pl.BlockSpec((None, HW, Cp), lambda b, k: (b, 0, 0)),   # x
                pl.BlockSpec((Cp, 3 * ICp), lambda b, k: (0, 0)),       # wqkv
                pl.BlockSpec((1, 3 * ICp), lambda b, k: (0, 0)),        # bqkv
                pl.BlockSpec((ICp, Cp), lambda b, k: (0, 0)),           # ww
                pl.BlockSpec((1, Cp), lambda b, k: (0, 0)),             # bw
            ],
            out_specs=pl.BlockSpec((None, HW, Cp), lambda b, k: (b, 0, 0)),
            scratch_shapes=[
                pltpu.VMEM((HW, ICp), jnp.bfloat16),   # theta_x
                pltpu.VMEM((HW, ICp), jnp.float32),    # y accumulator
            ],
        ),
        compiler_params=pltpu.CompilerParams(
            dimension_semantics=("parallel", "arbitrary"),
            vmem_limit_bytes=vmem_limit),
        cost_estimate=cost,
    )(x_mat, wqkv, bqkv, ww, bw)

    # (B, HW, Cp) -> drop channel padding -> NCHW
    out = out[:, :, :C]
    return jnp.transpose(out, (0, 2, 1)).reshape(B, C, H, W)


def nonlocal_block_2d_ref(x_nchw, params):
    """Pure-JAX reference mirroring the torch forward exactly (f32)."""
    B, C, H, W = x_nchw.shape
    HW = H * W
    x_flat = x_nchw.reshape(B, C, HW)                                   # (B,C,HW)

    def conv1x1(w, b):   # w: (out, in), b: (out,)
        return jnp.einsum("oc,bcn->bon", w, x_flat) + b[None, :, None]

    g_x = jnp.transpose(conv1x1(params["g_w"], params["g_b"]), (0, 2, 1))
    theta_x = jnp.transpose(conv1x1(params["theta_w"], params["theta_b"]), (0, 2, 1))
    phi_x = conv1x1(params["phi_w"], params["phi_b"])                   # (B,IC,HW)
    f = jnp.einsum("bnc,bcm->bnm", theta_x, phi_x)                      # (B,HW,HW)
    f_div_c = jax.nn.softmax(f, axis=1)                                 # torch dim=1
    y = jnp.einsum("bnm,bmc->bnc", f_div_c, g_x)                        # (B,HW,IC)
    y = jnp.transpose(y, (0, 2, 1))                                     # (B,IC,HW)
    w_y = jnp.einsum("oc,bcn->bon", params["W_w"], y) + params["W_b"][None, :, None]
    return (w_y + x_flat).reshape(B, C, H, W)


def init_params(key, in_channels, inter_channels):
    ks = jax.random.split(key, 8)

    def u(k, shape, fan_in):
        bound = 1.0 / np.sqrt(fan_in)
        return jax.random.uniform(k, shape, jnp.float32, -bound, bound)

    # NOTE: the PyTorch module zero-inits W.weight / W.bias; deterministic
    # random values are used here so the W-conv path is actually exercised.
    return {
        "g_w": u(ks[0], (inter_channels, in_channels), in_channels),
        "g_b": u(ks[1], (inter_channels,), in_channels),
        "theta_w": u(ks[2], (inter_channels, in_channels), in_channels),
        "theta_b": u(ks[3], (inter_channels,), in_channels),
        "phi_w": u(ks[4], (inter_channels, in_channels), in_channels),
        "phi_b": u(ks[5], (inter_channels,), in_channels),
        "W_w": u(ks[6], (in_channels, inter_channels), inter_channels),
        "W_b": u(ks[7], (in_channels,), inter_channels),
    }


if __name__ == "__main__":
    key = jax.random.PRNGKey(0)
    kx, kp = jax.random.split(key)

    B, C, H, W = 2, 4, 16, 16
    IC = 2
    x = jax.random.normal(kx, (B, C, H, W), jnp.float32)
    params = init_params(kp, C, IC)

    # tk=128 with HW=256 exercises the multi-key-tile accumulation path.
    out = jax.block_until_ready(nonlocal_block_2d(x, params, tk=128))
    ref = jax.block_until_ready(nonlocal_block_2d_ref(x, params))

    # bf16 MXU operands (f32 accumulation) -> compare at bf16-level tolerance.
    np.testing.assert_allclose(np.asarray(out), np.asarray(ref),
                               rtol=3e-2, atol=3e-2)
    print("KERNEL_OK")
</pallas_src>

<mosaic_0001>
module attributes {stable_mosaic.version = 11 : i64} {
  func.func @_nonlocal_kernel(%arg0: i32, %arg1: i32, %arg2: memref<1x256x128xf32, #tpu.memory_space<vmem>>, %arg3: memref<128x384xbf16, #tpu.memory_space<vmem>>, %arg4: memref<1x384xf32, #tpu.memory_space<vmem>>, %arg5: memref<128x128xbf16, #tpu.memory_space<vmem>>, %arg6: memref<1x128xf32, #tpu.memory_space<vmem>>, %arg7: memref<1x256x128xf32, #tpu.memory_space<vmem>>, %arg8: memref<256x128xbf16, #tpu.memory_space<vmem>>, %arg9: memref<256x128xf32, #tpu.memory_space<vmem>>) attributes {dimension_semantics = [#tpu.dimension_semantics<parallel>, #tpu.dimension_semantics<arbitrary>], iteration_bounds = array<i64: 2, 2>, scalar_prefetch = 0 : i64, scratch_operands = 2 : i64, tpu.core_type = #tpu.core_type<tc>, window_params = [{transform_indices = @transform_0, window_bounds = array<i64: 1, 256, 128>}, {pipeline_mode = #tpu.pipeline_mode<synchronous>, transform_indices = @transform_1, window_bounds = array<i64: 128, 384>}, {pipeline_mode = #tpu.pipeline_mode<synchronous>, transform_indices = @transform_2, window_bounds = array<i64: 1, 384>}, {pipeline_mode = #tpu.pipeline_mode<synchronous>, transform_indices = @transform_3, window_bounds = array<i64: 128, 128>}, {pipeline_mode = #tpu.pipeline_mode<synchronous>, transform_indices = @transform_4, window_bounds = array<i64: 1, 128>}, {transform_indices = @transform_5, window_bounds = array<i64: 1, 256, 128>}]} {
    %c0_i32 = arith.constant 0 : i32
    %0 = arith.cmpi eq, %arg1, %c0_i32 : i32
    %1 = arith.extui %0 : i1 to i32
    %c0_i32_0 = arith.constant 0 : i32
    %2 = arith.cmpi ne, %1, %c0_i32_0 : i32
    scf.if %2 {
      %c0_16 = arith.constant 0 : index
      %c0_17 = arith.constant 0 : index
      %c0_18 = arith.constant 0 : index
      %38 = vector.load %arg2[%c0_16, %c0_17, %c0_18] : memref<1x256x128xf32, #tpu.memory_space<vmem>>, vector<1x256x128xf32>
      %39 = vector.shape_cast %38 : vector<1x256x128xf32> to vector<256x128xf32>
      %40 = arith.truncf %39 : vector<256x128xf32> to vector<256x128xbf16>
      %c0_19 = arith.constant 0 : index
      %c0_20 = arith.constant 0 : index
      %41 = vector.load %arg3[%c0_19, %c0_20] : memref<128x384xbf16, #tpu.memory_space<vmem>>, vector<128x128xbf16>
      %cst_21 = arith.constant dense<0.000000e+00> : vector<256x128xf32>
      %42 = tpu.matmul %40, %41, %cst_21 {dimension_numbers = #tpu.dot_dimension_numbers<[1], [0], [0], [1], [0, 0, 1, 1], [], []>} : vector<256x128xbf16>, vector<128x128xbf16>, vector<256x128xf32> -> vector<256x128xf32>
      %c0_22 = arith.constant 0 : index
      %c0_23 = arith.constant 0 : index
      %43 = vector.load %arg4[%c0_22, %c0_23] : memref<1x384xf32, #tpu.memory_space<vmem>>, vector<1x128xf32>
      %44 = vector.broadcast %43 : vector<1x128xf32> to vector<256x128xf32>
      %45 = arith.addf %42, %44 : vector<256x128xf32>
      %46 = arith.truncf %45 : vector<256x128xf32> to vector<256x128xbf16>
      %c0_24 = arith.constant 0 : index
      %c0_25 = arith.constant 0 : index
      %47 = vector.load %arg8[%c0_24, %c0_25] : memref<256x128xbf16, #tpu.memory_space<vmem>>, vector<256x128xbf16>
      tpu.vector_store %arg8[%c0_24, %c0_25], %46 {strides = array<i32>} : memref<256x128xbf16, #tpu.memory_space<vmem>>, vector<256x128xbf16>,
      %cst_26 = arith.constant 0.000000e+00 : f32
      %48 = vector.broadcast %cst_26 : f32 to vector<256x128xf32>
      %c0_27 = arith.constant 0 : index
      %c0_28 = arith.constant 0 : index
      %49 = vector.load %arg9[%c0_27, %c0_28] : memref<256x128xf32, #tpu.memory_space<vmem>>, vector<256x128xf32>
      tpu.vector_store %arg9[%c0_27, %c0_28], %48 {strides = array<i32>} : memref<256x128xf32, #tpu.memory_space<vmem>>, vector<256x128xf32>,
    } else {
    }
    %c128_i32 = arith.constant 128 : i32
    %3 = arith.muli %arg1, %c128_i32 : i32
    %4 = tpu.assume_multiple %3, 128 : i32
    %c0 = arith.constant 0 : index
    %5 = arith.index_cast %4 : i32 to index
    %c0_1 = arith.constant 0 : index
    %6 = vector.load %arg2[%c0, %5, %c0_1] : memref<1x256x128xf32, #tpu.memory_space<vmem>>, vector<1x128x128xf32>
    %7 = vector.shape_cast %6 : vector<1x128x128xf32> to vector<128x128xf32>
    %8 = arith.truncf %7 : vector<128x128xf32> to vector<128x128xbf16>
    %c0_2 = arith.constant 0 : index
    %c128 = arith.constant 128 : index
    %9 = vector.load %arg3[%c0_2, %c128] : memref<128x384xbf16, #tpu.memory_space<vmem>>, vector<128x256xbf16>
    %cst = arith.constant dense<0.000000e+00> : vector<128x256xf32>
    %10 = tpu.matmul %8, %9, %cst {dimension_numbers = #tpu.dot_dimension_numbers<[1], [0], [0], [1], [0, 0, 1, 1], [], []>} : vector<128x128xbf16>, vector<128x256xbf16>, vector<128x256xf32> -> vector<128x256xf32>
    %c0_3 = arith.constant 0 : index
    %c128_4 = arith.constant 128 : index
    %11 = vector.load %arg4[%c0_3, %c128_4] : memref<1x384xf32, #tpu.memory_space<vmem>>, vector<1x256xf32>
    %12 = vector.broadcast %11 : vector<1x256xf32> to vector<128x256xf32>
    %13 = arith.addf %10, %12 : vector<128x256xf32>
    %14 = vector.extract_strided_slice %13 {offsets = [0, 0], sizes = [128, 128], strides = [1, 1]} : vector<128x256xf32> to vector<128x128xf32>
    %15 = arith.truncf %14 : vector<128x128xf32> to vector<128x128xbf16>
    %16 = vector.extract_strided_slice %13 {offsets = [0, 128], sizes = [128, 128], strides = [1, 1]} : vector<128x256xf32> to vector<128x128xf32>
    %17 = arith.truncf %16 : vector<128x128xf32> to vector<128x128xbf16>
    %c0_5 = arith.constant 0 : index
    %c0_6 = arith.constant 0 : index
    %18 = vector.load %arg8[%c0_5, %c0_6] : memref<256x128xbf16, #tpu.memory_space<vmem>>, vector<256x128xbf16>
    %cst_7 = arith.constant dense<0.000000e+00> : vector<256x128xf32>
    %19 = tpu.matmul %18, %17, %cst_7 {dimension_numbers = #tpu.dot_dimension_numbers<[1], [1], [0], [0], [0, 0, 1, 0], [], []>} : vector<256x128xbf16>, vector<128x128xbf16>, vector<256x128xf32> -> vector<256x128xf32>
    %cst_8 = arith.constant dense<0xFF800000> : vector<128xf32>
    %20 = vector.multi_reduction <maximumf>, %19, %cst_8 [0] : vector<256x128xf32> to vector<128xf32>
    %21 = vector.shape_cast %20 : vector<128xf32> to vector<1x128xf32>
    %22 = vector.broadcast %21 : vector<1x128xf32> to vector<256x128xf32>
    %23 = arith.subf %19, %22 : vector<256x128xf32>
    %24 = math.exp %23 : vector<256x128xf32>
    %cst_9 = arith.constant dense<0.000000e+00> : vector<128xf32>
    %25 = vector.multi_reduction <add>, %24, %cst_9 [0] : vector<256x128xf32> to vector<128xf32>
    %26 = vector.shape_cast %25 : vector<128xf32> to vector<1x128xf32>
    %27 = tpu.reciprocal %26 {approx = true} : vector<1x128xf32> -> vector<1x128xf32>
    %28 = vector.broadcast %27 : vector<1x128xf32> to vector<256x128xf32>
    %29 = arith.mulf %24, %28 : vector<256x128xf32>
    %c0_10 = arith.constant 0 : index
    %c0_11 = arith.constant 0 : index
    %30 = vector.load %arg9[%c0_10, %c0_11] : memref<256x128xf32, #tpu.memory_space<vmem>>, vector<256x128xf32>
    %31 = arith.truncf %29 : vector<256x128xf32> to vector<256x128xbf16>
    %cst_12 = arith.constant dense<0.000000e+00> : vector<256x128xf32>
    %32 = tpu.matmul %31, %15, %cst_12 {dimension_numbers = #tpu.dot_dimension_numbers<[1], [0], [0], [1], [0, 0, 1, 1], [], []>} : vector<256x128xbf16>, vector<128x128xbf16>, vector<256x128xf32> -> vector<256x128xf32>
    %33 = arith.addf %30, %32 : vector<256x128xf32>
    %c0_13 = arith.constant 0 : index
    %c0_14 = arith.constant 0 : index
    %34 = vector.load %arg9[%c0_13, %c0_14] : memref<256x128xf32, #tpu.memory_space<vmem>>, vector<256x128xf32>
    tpu.vector_store %arg9[%c0_13, %c0_14], %33 {strides = array<i32>} : memref<256x128xf32, #tpu.memory_space<vmem>>, vector<256x128xf32>,
    %c1_i32 = arith.constant 1 : i32
    %35 = arith.cmpi eq, %arg1, %c1_i32 : i32
    %36 = arith.extui %35 : i1 to i32
    %c0_i32_15 = arith.constant 0 : i32
    %37 = arith.cmpi ne, %36, %c0_i32_15 : i32
    scf.if %37 {
      %c0_16 = arith.constant 0 : index
      %c0_17 = arith.constant 0 : index
      %38 = vector.load %arg9[%c0_16, %c0_17] : memref<256x128xf32, #tpu.memory_space<vmem>>, vector<256x128xf32>
      %39 = arith.truncf %38 : vector<256x128xf32> to vector<256x128xbf16>
      %c0_18 = arith.constant 0 : index
      %c0_19 = arith.constant 0 : index
      %40 = vector.load %arg5[%c0_18, %c0_19] : memref<128x128xbf16, #tpu.memory_space<vmem>>, vector<128x128xbf16>
      %cst_20 = arith.constant dense<0.000000e+00> : vector<256x128xf32>
      %41 = tpu.matmul %39, %40, %cst_20 {dimension_numbers = #tpu.dot_dimension_numbers<[1], [0], [0], [1], [0, 0, 1, 1], [], []>} : vector<256x128xbf16>, vector<128x128xbf16>, vector<256x128xf32> -> vector<256x128xf32>
      %c0_21 = arith.constant 0 : index
      %c0_22 = arith.constant 0 : index
      %42 = vector.load %arg6[%c0_21, %c0_22] : memref<1x128xf32, #tpu.memory_space<vmem>>, vector<1x128xf32>
      %43 = vector.broadcast %42 : vector<1x128xf32> to vector<256x128xf32>
      %44 = arith.addf %41, %43 : vector<256x128xf32>
      %c0_23 = arith.constant 0 : index
      %c0_24 = arith.constant 0 : index
      %c0_25 = arith.constant 0 : index
      %45 = vector.load %arg2[%c0_23, %c0_24, %c0_25] : memref<1x256x128xf32, #tpu.memory_space<vmem>>, vector<1x256x128xf32>
      %46 = vector.shape_cast %45 : vector<1x256x128xf32> to vector<256x128xf32>
      %47 = arith.addf %44, %46 : vector<256x128xf32>
      %c0_26 = arith.constant 0 : index
      %c0_27 = arith.constant 0 : index
      %c0_28 = arith.constant 0 : index
      %48 = vector.load %arg7[%c0_26, %c0_27, %c0_28] : memref<1x256x128xf32, #tpu.memory_space<vmem>>, vector<1x256x128xf32>
      %49 = vector.shape_cast %48 : vector<1x256x128xf32> to vector<256x128xf32>
      %50 = vector.shape_cast %47 : vector<256x128xf32> to vector<1x256x128xf32>
      tpu.vector_store %arg7[%c0_26, %c0_27, %c0_28], %50 {strides = array<i32>} : memref<1x256x128xf32, #tpu.memory_space<vmem>>, vector<1x256x128xf32>,
    } else {
    }
    return
  }
  func.func @transform_0(%arg0: i32, %arg1: i32) -> (i32, i32, i32) {
    %c0_i32 = arith.constant 0 : i32
    %c0_i32_0 = arith.constant 0 : i32
    %c0_i32_1 = arith.constant 0 : i32
    return %arg0, %c0_i32, %c0_i32_0 : i32, i32, i32
  }
  func.func @transform_1(%arg0: i32, %arg1: i32) -> (i32, i32) {
    %c0_i32 = arith.constant 0 : i32
    %c0_i32_0 = arith.constant 0 : i32
    %c0_i32_1 = arith.constant 0 : i32
    return %c0_i32, %c0_i32_0 : i32, i32
  }
  func.func @transform_2(%arg0: i32, %arg1: i32) -> (i32, i32) {
    %c0_i32 = arith.constant 0 : i32
    %c0_i32_0 = arith.constant 0 : i32
    %c0_i32_1 = arith.constant 0 : i32
    return %c0_i32, %c0_i32_0 : i32, i32
  }
  func.func @transform_3(%arg0: i32, %arg1: i32) -> (i32, i32) {
    %c0_i32 = arith.constant 0 : i32
    %c0_i32_0 = arith.constant 0 : i32
    %c0_i32_1 = arith.constant 0 : i32
    return %c0_i32, %c0_i32_0 : i32, i32
  }
  func.func @transform_4(%arg0: i32, %arg1: i32) -> (i32, i32) {
    %c0_i32 = arith.constant 0 : i32
    %c0_i32_0 = arith.constant 0 : i32
    %c0_i32_1 = arith.constant 0 : i32
    return %c0_i32, %c0_i32_0 : i32, i32
  }
  func.func @transform_5(%arg0: i32, %arg1: i32) -> (i32, i32, i32) {
    %c0_i32 = arith.constant 0 : i32
    %c0_i32_0 = arith.constant 0 : i32
    %c0_i32_1 = arith.constant 0 : i32
    return %arg0, %c0_i32, %c0_i32_0 : i32, i32, i32
  }
}

</mosaic_0001>

<llo_original>
// kernel: tpu_custom_call.1
$region0: #{tpu_custom_call.1}
  #allocation0 [shape = 'u32[]', space=smem, size = 0x4, offset = 0x4, fixed_abs, tag = 'smem constant byte address 0x4 - core index']
  #allocation1 [shape = 'u32[144,128]{1,0:T(1,128)}', space=vmem, size = 0x12000, scoped, tag = 'internal scratch']
  #allocation2 [shape = 'bf16[256,128]{1,0:T(16,128)(2,1)}', space=vmem, size = 0x10000, scoped, tag = 'scratch operand']
  #allocation3 [shape = 'f32[256,128]{1,0:T(8,128)}', space=vmem, size = 0x20000, scoped, tag = 'scratch operand']
  %s0 = inlined_call_operand.hbm [shape: f32[2,256,128], index: 0, kind: input, shape index: {}]
  %s1 = inlined_call_operand.hbm [shape: bf16[128,384], index: 1, kind: input, shape index: {}]
  %s2 = inlined_call_operand.vmem [shape: f32[1,384], index: 2, kind: input, shape index: {}]
  %s3 = inlined_call_operand.hbm [shape: bf16[128,128], index: 3, kind: input, shape index: {}]
  %s4 = inlined_call_operand.vmem [shape: f32[1,128], index: 4, kind: input, shape index: {}]
  %s5 = inlined_call_operand.hbm [shape: f32[2,256,128], index: 5, kind: output, shape index: {}]
  %s6 = sld [smem:[#allocation0]]
  $region73: #{tpu_custom_call.1} parent=0
    _
  %s8 = ssub.s32 1, %s6
  %s9 = scalar_select 0, %s8, %s6
  $region1: #{tpu_custom_call.1} parent=0
    #allocation4 [shape = 'u8[262144]{0}', space=vmem, size = 0x40000, scoped, tag = 'input window, operand 0']
    #allocation5 [shape = 's32[2]{0}', space=sflag, size = 0x8, scoped, tag = 'scoped memory for tpu_custom_call.1']
    #allocation6 [shape = 's32[2]{0}', space=sflag, size = 0x8, scoped, tag = 'scoped memory for tpu_custom_call.1']
    #allocation7 [shape = 'u8[98304]{0}', space=vmem, size = 0x18000, scoped, tag = 'input window, operand 1, single buffered']
    #allocation8 [shape = 's32[1]{0}', space=sflag, size = 0x4, scoped, tag = 'scoped memory for tpu_custom_call.1']
    #allocation9 [shape = 'u8[32768]{0}', space=vmem, size = 0x8000, scoped, tag = 'input window, operand 3, single buffered']
    #allocation10 [shape = 'u8[262144]{0}', space=vmem, size = 0x40000, scoped, tag = 'output window, operand 0']
    %10 = vsyncpa [#allocation5], 0
    %s11 = scalar_lea.sflag [#allocation5], 1
    %12 = vsyncpa %s11, 0
    %13 = vsyncpa [#allocation8], 0
    %14 = vsyncpa [#allocation6], 0
    %s15 = scalar_lea.sflag [#allocation6], 1
    %16 = vsyncpa %s15, 0
    loop: start=0, step=1, limit=6
    $region2: #{tpu_custom_call.1} parent=1 // loop_pre_header
      _
    $region3: #{tpu_custom_call.1} parent=1 // loop_header
      %s18 = sphi 0, %s22
      %p19 = scmp.ge.s32.totalorder %s18, 6
      %s25 = sphi 0, %s37
      %s26 = sphi 0, %s33
      %s27 = sphi 0, %s25
      %s28 = sphi 0, %s26
      %s29 = sphi 0, %s27
      %s30 = sphi 0, %s28
      %s40 = sphi 0, %s42
      %s43 = sphi 0, %s40
      %s44 = sphi 0, %s43
      %s60 = sphi 0, %s44
      %s64 = sphi 0, %s64
      %s66 = sphi 0, %s64
      %s67 = sphi 0, %s66
      %s81 = sphi 0, %s67
      %s85 = sphi 0, %s85
      %s87 = sphi 0, %s85
      %s88 = sphi 0, %s87
      %s102 = sphi 0, %s88
      %s106 = sphi 0, %s106
      %s108 = sphi 0, %s106
      %s109 = sphi 0, %s108
      %s123 = sphi 0, %s109
      %s127 = sphi 0, %s127
      %s129 = sphi 0, %s127
      %s130 = sphi 0, %s129
      %s144 = sphi 0, %s130
      %s150 = sphi 0, %s152
      %s153 = sphi 0, %s150
      %s154 = sphi 0, %s153
      %s170 = sphi 0, %s154
    $region4: #{tpu_custom_call.1} parent=1 // loop_header_branch
      %21 = sbr.rel (%p19) target = $region8
    $region5: #{tpu_custom_call.1} parent=1 // loop_body
      %s23 = ssub.s32 %s18, 1
      %s24 = ssub.s32 %s18, 2
      %s31 = sadd.s32 1, %s26
      %p32 = scmp.ge.s32.totalorder %s31, 2
      %s33 = scalar_select %p32, 0, %s31
      %s34 = sadd.s32 1, %s25
      %s35 = scalar_select %p32, %s34, %s25
      %p36 = scmp.ge.s32.totalorder %s35, 2
      %s37 = scalar_select %p36, 0, %s35
      %s38 = ssub.s32 %s25, %s37
      %p39 = scmp.eq.s32.totalorder %s38, 0
      %s41 = sadd.s32 %s40, 1
      %s42 = scalar_select %p39, %s40, %s41
      %p45 = pneg %p39
      %p46 = scmp.eq.s32.totalorder %s18, 3
      %p47 = por %p45, %p46
      %p48 = scmp.ne.s32.totalorder %s40, %s43
      %p49 = scmp.eq.s32.totalorder %s18, 0
      %p50 = por %p48, %p49
      %p51 = scmp.ne.s32.totalorder %s40, %s43
      %p52 = scmp.eq.s32.totalorder %s23, 3
      %p53 = por %p51, %p52
      %p54 = scmp.ne.s32.totalorder %s43, %s44
      %p55 = scmp.eq.s32.totalorder %s23, 0
      %p56 = por %p54, %p55
      %p57 = scmp.ne.s32.totalorder %s43, %s44
      %p58 = scmp.eq.s32.totalorder %s24, 3
      %p59 = por %p57, %p58
      %p61 = scmp.ne.s32.totalorder %s44, %s60
      %p62 = scmp.eq.s32.totalorder %s24, 0
      %p63 = por %p61, %p62
      %s65 = sadd.s32 %s64, 1
      %p68 = scmp.eq.s32.totalorder %s18, 3
      %p69 = scmp.ne.s32.totalorder %s64, %s66
      %p70 = scmp.eq.s32.totalorder %s18, 0
      %p71 = por %p69, %p70
      %p72 = scmp.ne.s32.totalorder %s64, %s66
      %p73 = scmp.eq.s32.totalorder %s23, 3
      %p74 = por %p72, %p73
      %p75 = scmp.ne.s32.totalorder %s66, %s67
      %p76 = scmp.eq.s32.totalorder %s23, 0
      %p77 = por %p75, %p76
      %p78 = scmp.ne.s32.totalorder %s66, %s67
      %p79 = scmp.eq.s32.totalorder %s24, 3
      %p80 = por %p78, %p79
      %p82 = scmp.ne.s32.totalorder %s67, %s81
      %p83 = scmp.eq.s32.totalorder %s24, 0
      %p84 = por %p82, %p83
      %s86 = sadd.s32 %s85, 1
      %p89 = scmp.eq.s32.totalorder %s18, 3
      %p90 = scmp.ne.s32.totalorder %s85, %s87
      %p91 = scmp.eq.s32.totalorder %s18, 0
      %p92 = por %p90, %p91
      %p93 = scmp.ne.s32.totalorder %s85, %s87
      %p94 = scmp.eq.s32.totalorder %s23, 3
      %p95 = por %p93, %p94
      %p96 = scmp.ne.s32.totalorder %s87, %s88
      %p97 = scmp.eq.s32.totalorder %s23, 0
      %p98 = por %p96, %p97
      %p99 = scmp.ne.s32.totalorder %s87, %s88
      %p100 = scmp.eq.s32.totalorder %s24, 3
      %p101 = por %p99, %p100
      %p103 = scmp.ne.s32.totalorder %s88, %s102
      %p104 = scmp.eq.s32.totalorder %s24, 0
      %p105 = por %p103, %p104
      %s107 = sadd.s32 %s106, 1
      %p110 = scmp.eq.s32.totalorder %s18, 3
      %p111 = scmp.ne.s32.totalorder %s106, %s108
      %p112 = scmp.eq.s32.totalorder %s18, 0
      %p113 = por %p111, %p112
      %p114 = scmp.ne.s32.totalorder %s106, %s108
      %p115 = scmp.eq.s32.totalorder %s23, 3
      %p116 = por %p114, %p115
      %p117 = scmp.ne.s32.totalorder %s108, %s109
      %p118 = scmp.eq.s32.totalorder %s23, 0
      %p119 = por %p117, %p118
      %p120 = scmp.ne.s32.totalorder %s108, %s109
      %p121 = scmp.eq.s32.totalorder %s24, 3
      %p122 = por %p120, %p121
      %p124 = scmp.ne.s32.totalorder %s109, %s123
      %p125 = scmp.eq.s32.totalorder %s24, 0
      %p126 = por %p124, %p125
      %s128 = sadd.s32 %s127, 1
      %p131 = scmp.eq.s32.totalorder %s18, 3
      %p132 = scmp.ne.s32.totalorder %s127, %s129
      %p133 = scmp.eq.s32.totalorder %s18, 0
      %p134 = por %p132, %p133
      %p135 = scmp.ne.s32.totalorder %s127, %s129
      %p136 = scmp.eq.s32.totalorder %s23, 3
      %p137 = por %p135, %p136
      %p138 = scmp.ne.s32.totalorder %s129, %s130
      %p139 = scmp.eq.s32.totalorder %s23, 0
      %p140 = por %p138, %p139
      %p141 = scmp.ne.s32.totalorder %s129, %s130
      %p142 = scmp.eq.s32.totalorder %s24, 3
      %p143 = por %p141, %p142
      %p145 = scmp.ne.s32.totalorder %s130, %s144
      %p146 = scmp.eq.s32.totalorder %s24, 0
      %p147 = por %p145, %p146
      %s148 = ssub.s32 %s25, %s37
      %p149 = scmp.eq.s32.totalorder %s148, 0
      %s151 = sadd.s32 %s150, 1
      %s152 = scalar_select %p149, %s150, %s151
      %p155 = pneg %p149
      %p156 = scmp.eq.s32.totalorder %s18, 3
      %p157 = por %p155, %p156
      %p158 = scmp.ne.s32.totalorder %s150, %s153
      %p159 = scmp.eq.s32.totalorder %s18, 0
      %p160 = por %p158, %p159
      %p161 = scmp.ne.s32.totalorder %s150, %s153
      %p162 = scmp.eq.s32.totalorder %s23, 3
      %p163 = por %p161, %p162
      %p164 = scmp.ne.s32.totalorder %s153, %s154
      %p165 = scmp.eq.s32.totalorder %s23, 0
      %p166 = por %p164, %p165
      %p167 = scmp.ne.s32.totalorder %s153, %s154
      %p168 = scmp.eq.s32.totalorder %s24, 3
      %p169 = por %p167, %p168
      %p171 = scmp.ne.s32.totalorder %s154, %s170
      %p172 = scmp.eq.s32.totalorder %s24, 0
      %p173 = por %p171, %p172
      %p174 = scmp.le.s32.totalorder 1, %s18
      %p175 = scmp.lt.s32.totalorder %s18, 5
      %p176 = pnand %p174, %p175
      %p177 = pneg %p176
      // Predicated region
      $region9: #{tpu_custom_call.1} parent=5 // pred_check
        _
      $region10: #{tpu_custom_call.1} parent=5 // pred_check_branch
        %179 = sbr.rel (%p176) target = $region12
      $region11: #{tpu_custom_call.1} parent=5 // pred_region
        %s180 = ssub.s32 %s18, 1
        // Predicated region
        $region13: #{tpu_custom_call.1} parent=11 // pred_check
          %p181 = pneg %p77
        $region14: #{tpu_custom_call.1} parent=11 // pred_check_branch
          %183 = sbr.rel (%p181) target = $region16
        $region15: #{tpu_custom_call.1} parent=11 // pred_region
          %s185 = ssub.s32 3072, 3072
          %186 = vsyncadd [#allocation8], %s185
          %s187 = sshll.u32 [#allocation7], 4
          %s188 = int_to_ptr.vmem [resolvable:$true] %s187
          %193 = dma.hbm_to_vmem [thread:$0]  %s1, 3072, %s188, [#allocation8], 192, 192, 12
        $region16: #{tpu_custom_call.1} parent=11 // pred_fallthru
          _
        // Predicated region
        $region17: #{tpu_custom_call.1} parent=11 // pred_check
          %p194 = pneg %p98
        $region18: #{tpu_custom_call.1} parent=11 // pred_check_branch
          %196 = sbr.rel (%p194) target = $region20
        $region19: #{tpu_custom_call.1} parent=11 // pred_region
          _
        $region20: #{tpu_custom_call.1} parent=11 // pred_fallthru
          _
        // Predicated region
        $region21: #{tpu_custom_call.1} parent=11 // pred_check
          %p197 = pneg %p119
        $region22: #{tpu_custom_call.1} parent=11 // pred_check_branch
          %199 = sbr.rel (%p197) target = $region24
        $region23: #{tpu_custom_call.1} parent=11 // pred_region
          %s201 = ssub.s32 1024, 1024
          %202 = vsyncadd [#allocation8], %s201
          %s203 = sshll.u32 [#allocation9], 4
          %s204 = int_to_ptr.vmem [resolvable:$true] %s203
          %209 = dma.hbm_to_vmem [thread:$0]  %s3, 1024, %s204, [#allocation8], 64, 64, 4
        $region24: #{tpu_custom_call.1} parent=11 // pred_fallthru
          _
        // Predicated region
        $region25: #{tpu_custom_call.1} parent=11 // pred_check
          %p210 = pneg %p140
        $region26: #{tpu_custom_call.1} parent=11 // pred_check_branch
          %212 = sbr.rel (%p210) target = $region28
        $region27: #{tpu_custom_call.1} parent=11 // pred_region
          _
        $region28: #{tpu_custom_call.1} parent=11 // pred_fallthru
          _
      $region12: #{tpu_custom_call.1} parent=5 // pred_fallthru
        _
      %p213 = scmp.lt.s32.totalorder %s18, 4
      // Predicated region
      $region29: #{tpu_custom_call.1} parent=5 // pred_check
        %p214 = pneg %p213
      $region30: #{tpu_custom_call.1} parent=5 // pred_check_branch
        %216 = sbr.rel (%p214) target = $region32
      $region31: #{tpu_custom_call.1} parent=5 // pred_region
        // Predicated region
        $region33: #{tpu_custom_call.1} parent=31 // pred_check
          %p217 = pneg %p50
        $region34: #{tpu_custom_call.1} parent=31 // pred_check_branch
          %219 = sbr.rel (%p217) target = $region36
        $region35: #{tpu_custom_call.1} parent=31 // pred_region
          %s220 = sand.u32 %s40, 1
          %s221 = scalar_lea.sflag [#allocation5], %s220
          %s222 = sand.u32 %s40, 1
          %s223 = smul.addr %s222, 256
          %s224 = scalar_lea.vmem [#allocation4], %s223
          %s226 = ssub.s32 4096, 4096
          %227 = vsyncadd %s221, %s226
          %s228 = smul.addr %s25, 32
          %s229 = smul.addr %s228, 128
          %s230 = scalar_lea.hbm %s0, %s229
          %s231 = sshll.u32 %s224, 4
          %s232 = int_to_ptr.vmem [resolvable:$true] %s231
          %237 = dma.hbm_to_vmem [thread:$0]  %s230, 4096, %s232, %s221, 128, 128, 8
        $region36: #{tpu_custom_call.1} parent=31 // pred_fallthru
          _
      $region32: #{tpu_custom_call.1} parent=5 // pred_fallthru
        _
      %p238 = scmp.le.s32.totalorder 1, %s18
      %p239 = scmp.lt.s32.totalorder %s18, 5
      %p240 = pnand %p238, %p239
      %p241 = pneg %p240
      // Predicated region
      $region37: #{tpu_custom_call.1} parent=5 // pred_check
        _
      $region38: #{tpu_custom_call.1} parent=5 // pred_check_branch
        %243 = sbr.rel (%p240) target = $region40
      $region39: #{tpu_custom_call.1} parent=5 // pred_region
        %s244 = ssub.s32 %s18, 1
        %s245 = sand.u32 %s43, 1
        %s246 = scalar_lea.sflag [#allocation5], %s245
        %s247 = sand.u32 %s43, 1
        %s248 = smul.addr %s247, 256
        %s249 = scalar_lea.vmem [#allocation4], %s248
        // Predicated region
        $region41: #{tpu_custom_call.1} parent=39 // pred_check
          %p250 = pneg %p56
        $region42: #{tpu_custom_call.1} parent=39 // pred_check_branch
          %252 = sbr.rel (%p250) target = $region44
        $region43: #{tpu_custom_call.1} parent=39 // pred_region
          %253 = dma.done %s246, 4096
        $region44: #{tpu_custom_call.1} parent=39 // pred_fallthru
          _
        // Predicated region
        $region45: #{tpu_custom_call.1} parent=39 // pred_check
          %p254 = pneg %p77
        $region46: #{tpu_custom_call.1} parent=39 // pred_check_branch
          %256 = sbr.rel (%p254) target = $region48
        $region47: #{tpu_custom_call.1} parent=39 // pred_region
          %257 = dma.done [#allocation8], 3072
        $region48: #{tpu_custom_call.1} parent=39 // pred_fallthru
          _
        // Predicated region
        $region49: #{tpu_custom_call.1} parent=39 // pred_check
          %p258 = pneg %p119
        $region50: #{tpu_custom_call.1} parent=39 // pred_check_branch
          %260 = sbr.rel (%p258) target = $region52
        $region51: #{tpu_custom_call.1} parent=39 // pred_region
          %261 = dma.done [#allocation8], 1024
        $region52: #{tpu_custom_call.1} parent=39 // pred_fallthru
          _
        %s262 = sand.u32 %s43, 1
        %s263 = scalar_lea.sflag [#allocation5], %s262
        %s264 = sand.u32 %s43, 1
        %s265 = smul.addr %s264, 256
        %s266 = scalar_lea.vmem [#allocation4], %s265
        %p267 = pneg %p56
        %p268 = pneg %p53
        %p269 = pneg %p77
        %p270 = pneg %p74
        %p271 = pneg %p98
        %p272 = pneg %p95
        %p273 = pneg %p119
        %p274 = pneg %p116
        %p275 = pneg %p140
        %p276 = pneg %p137
        %p277 = pneg %p166
        %p278 = pneg %p163
        %s279 = sand.u32 %s153, 1
        %s280 = scalar_lea.sflag [#allocation6], %s279
        %s281 = sand.u32 %s153, 1
        %s282 = smul.addr %s281, 256
        %s283 = scalar_lea.vmem [#allocation10], %s282
        %p285 = scmp.eq.s32.totalorder %s28, 0
        // Predicated region
        $region53: #{tpu_custom_call.1} parent=39 // pred_check
          %p286 = pneg %p285
        $region54: #{tpu_custom_call.1} parent=39 // pred_check_branch
          %288 = sbr.rel (%p286) target = $region56
        $region55: #{tpu_custom_call.1} parent=39 // pred_region
          %v289 = vld [vmem:[%s249] sm:$0xff]
          %v290 = vld [vmem:[%s249 + $0x8] sm:$0xff]
          %v291 = vld [vmem:[%s249 + $0x10] sm:$0xff]
          %v292 = vld [vmem:[%s249 + $0x18] sm:$0xff]
          %v293 = vld [vmem:[%s249 + $0x20] sm:$0xff]
          %v294 = vld [vmem:[%s249 + $0x28] sm:$0xff]
          %v295 = vld [vmem:[%s249 + $0x30] sm:$0xff]
          %v296 = vld [vmem:[%s249 + $0x38] sm:$0xff]
          %v297 = vld [vmem:[%s249 + $0x40] sm:$0xff]
          %v298 = vld [vmem:[%s249 + $0x48] sm:$0xff]
          %v299 = vld [vmem:[%s249 + $0x50] sm:$0xff]
          %v300 = vld [vmem:[%s249 + $0x58] sm:$0xff]
          %v301 = vld [vmem:[%s249 + $0x60] sm:$0xff]
          %v302 = vld [vmem:[%s249 + $0x68] sm:$0xff]
          %v303 = vld [vmem:[%s249 + $0x70] sm:$0xff]
          %v304 = vld [vmem:[%s249 + $0x78] sm:$0xff]
          %v305 = vld [vmem:[%s249 + $0x80] sm:$0xff]
          %v306 = vld [vmem:[%s249 + $0x88] sm:$0xff]
          %v307 = vld [vmem:[%s249 + $0x90] sm:$0xff]
          %v308 = vld [vmem:[%s249 + $0x98] sm:$0xff]
          %v309 = vld [vmem:[%s249 + $0xa0] sm:$0xff]
          %v310 = vld [vmem:[%s249 + $0xa8] sm:$0xff]
          %v311 = vld [vmem:[%s249 + $0xb0] sm:$0xff]
          %v312 = vld [vmem:[%s249 + $0xb8] sm:$0xff]
          %v313 = vld [vmem:[%s249 + $0xc0] sm:$0xff]
          %v314 = vld [vmem:[%s249 + $0xc8] sm:$0xff]
          %v315 = vld [vmem:[%s249 + $0xd0] sm:$0xff]
          %v316 = vld [vmem:[%s249 + $0xd8] sm:$0xff]
          %v317 = vld [vmem:[%s249 + $0xe0] sm:$0xff]
          %v318 = vld [vmem:[%s249 + $0xe8] sm:$0xff]
          %v319 = vld [vmem:[%s249 + $0xf0] sm:$0xff]
          %v320 = vld [vmem:[%s249 + $0xf8] sm:$0xff]
          %v321 = vpack.c.bf16 %v290, %v289
          %v322 = vpack.c.bf16 %v292, %v291
          %v323 = vpack.c.bf16 %v294, %v293
          %v324 = vpack.c.bf16 %v296, %v295
          %v325 = vpack.c.bf16 %v298, %v297
          %v326 = vpack.c.bf16 %v300, %v299
          %v327 = vpack.c.bf16 %v302, %v301
          %v328 = vpack.c.bf16 %v304, %v303
          %v329 = vpack.c.bf16 %v306, %v305
          %v330 = vpack.c.bf16 %v308, %v307
          %v331 = vpack.c.bf16 %v310, %v309
          %v332 = vpack.c.bf16 %v312, %v311
          %v333 = vpack.c.bf16 %v314, %v313
          %v334 = vpack.c.bf16 %v316, %v315
          %v335 = vpack.c.bf16 %v318, %v317
          %v336 = vpack.c.bf16 %v320, %v319
          %v337 = vld [vmem:[#allocation7] sm:$0xf]
          %v338 = vld [vmem:[#allocation7 + $0xc] sm:$0xf]
          %v339 = vld [vmem:[#allocation7 + $0x18] sm:$0xf]
          %v340 = vld [vmem:[#allocation7 + $0x24] sm:$0xf]
          %v341 = vld [vmem:[#allocation7 + $0x30] sm:$0xf]
          %v342 = vld [vmem:[#allocation7 + $0x3c] sm:$0xf]
          %v343 = vld [vmem:[#allocation7 + $0x48] sm:$0xf]
          %v344 = vld [vmem:[#allocation7 + $0x54] sm:$0xf]
          %v345 = vld [vmem:[#allocation7 + $0x60] sm:$0xf]
          %v346 = vld [vmem:[#allocation7 + $0x6c] sm:$0xf]
          %v347 = vld [vmem:[#allocation7 + $0x78] sm:$0xf]
          %v348 = vld [vmem:[#allocation7 + $0x84] sm:$0xf]
          %v349 = vld [vmem:[#allocation7 + $0x90] sm:$0xf]
          %v350 = vld [vmem:[#allocation7 + $0x9c] sm:$0xf]
          %v351 = vld [vmem:[#allocation7 + $0xa8] sm:$0xf]
          %v352 = vld [vmem:[#allocation7 + $0xb4] sm:$0xf]
          %v353 = vld [vmem:[%s2] sm:$0x1]
          %v355 = vlaneseq
          %v356 = vshrl.u32 %v355, 7
          %v357 = vsub.s32 0, %v356
          %v358 = vrot.slane %v353, %v357
          %v376 = vunpack.c.l.b16 %v337
          %v377 = vunpack.c.l.b16 %v338
          %v378 = vunpack.c.l.b16 %v339
          %v379 = vunpack.c.l.b16 %v340
          %v380 = vunpack.c.l.b16 %v341
          %v381 = vunpack.c.l.b16 %v342
          %v382 = vunpack.c.l.b16 %v343
          %v383 = vunpack.c.l.b16 %v344
          %v384 = vunpack.c.l.b16 %v345
          %v385 = vunpack.c.l.b16 %v346
          %v386 = vunpack.c.l.b16 %v347
          %v387 = vunpack.c.l.b16 %v348
          %v388 = vunpack.c.l.b16 %v349
          %v389 = vunpack.c.l.b16 %v350
          %v390 = vunpack.c.l.b16 %v351
          %v391 = vunpack.c.l.b16 %v352
          %v392 = vpack.c.b16 %v377, %v376
          %v393 = vpack.c.b16 %v379, %v378
          %v394 = vpack.c.b16 %v381, %v380
          %v395 = vpack.c.b16 %v383, %v382
          %v396 = vpack.c.b16 %v385, %v384
          %v397 = vpack.c.b16 %v387, %v386
          %v398 = vpack.c.b16 %v389, %v388
          %v399 = vpack.c.b16 %v391, %v390
          %408 = vmatprep.subr.bf16.mxu0 0
          %409 = vmatpush1.bf16.msra.mxu0 %v392
          %410 = vmatprep.subr.bf16.mxu0 0
          %411 = vmatpush1.bf16.msra.mxu0 %v393
          %412 = vmatprep.subr.bf16.mxu0 0
          %413 = vmatpush1.bf16.msra.mxu0 %v394
          %414 = vmatprep.subr.bf16.mxu0 0
          %415 = vmatpush1.bf16.msra.mxu0 %v395
          %416 = vmatprep.subr.bf16.mxu0 0
          %417 = vmatpush1.bf16.msra.mxu0 %v396
          %418 = vmatprep.subr.bf16.mxu0 0
          %419 = vmatpush1.bf16.msra.mxu0 %v397
          %420 = vmatprep.subr.bf16.mxu0 0
          %421 = vmatpush1.bf16.msra.mxu0 %v398
          %422 = vmatprep.subr.bf16.mxu0 0
          %423 = vmatpush1.bf16.msra.mxu0 %v399
          %424 = vmatprep.subr.bf16.mxu0 0
          %425 = vmatpush1.bf16.msra.mxu0 0
          %426 = vmatprep.subr.bf16.mxu0 0
          %427 = vmatpush1.bf16.msra.mxu0 0
          %428 = vmatprep.subr.bf16.mxu0 0
          %429 = vmatpush1.bf16.msra.mxu0 0
          %430 = vmatprep.subr.bf16.mxu0 0
          %431 = vmatpush1.bf16.msra.mxu0 0
          %432 = vmatprep.subr.bf16.mxu0 0
          %433 = vmatpush1.bf16.msra.mxu0 0
          %434 = vmatprep.subr.bf16.mxu0 0
          %435 = vmatpush1.bf16.msra.mxu0 0
          %436 = vmatprep.subr.bf16.mxu0 0
          %437 = vmatpush1.bf16.msra.mxu0 0
          %438 = vmatprep.subr.bf16.mxu0 0
          %439 = vmatpush1.bf16.msra.mxu0 0
          %440 = vmatprep.mubr.bf16.mxu0 0
          %441 = vmatmul.mubr.bf16.gmra.mrb[0].mxu0 %v321
          %v442 = vpop.f32.mrb[0].mxu0
          %v443 = vadd.f32 %v358, %v442
          %v444 = vpop.f32.mrb[0].mxu0
          %v445 = vpop.f32.mrb[0].mxu0
          %v446 = vadd.f32 %v358, %v445
          %v447 = vpop.f32.mrb[0].mxu0
          %448 = vmatprep.mubr.bf16.mxu0 0
          %449 = vmatmul.mubr.bf16.gmra.mrb[0].mxu0 %v322
          %v450 = vpop.f32.mrb[0].mxu0
          %v451 = vadd.f32 %v358, %v450
          %v452 = vpop.f32.mrb[0].mxu0
          %v453 = vpop.f32.mrb[0].mxu0
          %v454 = vadd.f32 %v358, %v453
          %v455 = vpop.f32.mrb[0].mxu0
          %456 = vmatprep.mubr.bf16.mxu0 0
          %457 = vmatmul.mubr.bf16.gmra.mrb[0].mxu0 %v323
          %v458 = vpop.f32.mrb[0].mxu0
          %v459 = vadd.f32 %v358, %v458
          %v460 = vpop.f32.mrb[0].mxu0
          %v461 = vpop.f32.mrb[0].mxu0
          %v462 = vadd.f32 %v358, %v461
          %v463 = vpop.f32.mrb[0].mxu0
          %464 = vmatprep.mubr.bf16.mxu0 0
          %465 = vmatmul.mubr.bf16.gmra.mrb[0].mxu0 %v324
          %v466 = vpop.f32.mrb[0].mxu0
          %v467 = vadd.f32 %v358, %v466
          %v468 = vpop.f32.mrb[0].mxu0
          %v469 = vpop.f32.mrb[0].mxu0
          %v470 = vadd.f32 %v358, %v469
          %v471 = vpop.f32.mrb[0].mxu0
          %472 = vmatprep.mubr.bf16.mxu0 0
          %473 = vmatmul.mubr.bf16.gmra.mrb[0].mxu0 %v325
          %v474 = vpop.f32.mrb[0].mxu0
          %v475 = vadd.f32 %v358, %v474
          %v476 = vpop.f32.mrb[0].mxu0
          %v477 = vpop.f32.mrb[0].mxu0
          %v478 = vadd.f32 %v358, %v477
          %v479 = vpop.f32.mrb[0].mxu0
          %480 = vmatprep.mubr.bf16.mxu0 0
          %481 = vmatmul.mubr.bf16.gmra.mrb[0].mxu0 %v326
          %v482 = vpop.f32.mrb[0].mxu0
          %v483 = vadd.f32 %v358, %v482
          %v484 = vpop.f32.mrb[0].mxu0
          %v485 = vpop.f32.mrb[0].mxu0
          %v486 = vadd.f32 %v358, %v485
          %v487 = vpop.f32.mrb[0].mxu0
          %488 = vmatprep.mubr.bf16.mxu0 0
          %489 = vmatmul.mubr.bf16.gmra.mrb[0].mxu0 %v327
          %v490 = vpop.f32.mrb[0].mxu0
          %v491 = vadd.f32 %v358, %v490
          %v492 = vpop.f32.mrb[0].mxu0
          %v493 = vpop.f32.mrb[0].mxu0
          %v494 = vadd.f32 %v358, %v493
          %v495 = vpop.f32.mrb[0].mxu0
          %496 = vmatprep.mubr.bf16.mxu0 0
          %497 = vmatmul.mubr.bf16.gmra.mrb[0].mxu0 %v328
          %v498 = vpop.f32.mrb[0].mxu0
          %v499 = vadd.f32 %v358, %v498
          %v500 = vpop.f32.mrb[0].mxu0
          %v501 = vpop.f32.mrb[0].mxu0
          %v502 = vadd.f32 %v358, %v501
          %v503 = vpop.f32.mrb[0].mxu0
          %504 = vmatprep.mubr.bf16.mxu0 0
          %505 = vmatmul.mubr.bf16.gmra.mrb[0].mxu0 %v329
          %v506 = vpop.f32.mrb[0].mxu0
          %v507 = vadd.f32 %v358, %v506
          %v508 = vpop.f32.mrb[0].mxu0
          %v509 = vpop.f32.mrb[0].mxu0
          %v510 = vadd.f32 %v358, %v509
          %v511 = vpop.f32.mrb[0].mxu0
          %512 = vmatprep.mubr.bf16.mxu0 0
          %513 = vmatmul.mubr.bf16.gmra.mrb[0].mxu0 %v330
          %v514 = vpop.f32.mrb[0].mxu0
          %v515 = vadd.f32 %v358, %v514
          %v516 = vpop.f32.mrb[0].mxu0
          %v517 = vpop.f32.mrb[0].mxu0
          %v518 = vadd.f32 %v358, %v517
          %v519 = vpop.f32.mrb[0].mxu0
          %520 = vmatprep.mubr.bf16.mxu0 0
          %521 = vmatmul.mubr.bf16.gmra.mrb[0].mxu0 %v331
          %v522 = vpop.f32.mrb[0].mxu0
          %v523 = vadd.f32 %v358, %v522
          %v524 = vpop.f32.mrb[0].mxu0
          %v525 = vpop.f32.mrb[0].mxu0
          %v526 = vadd.f32 %v358, %v525
          %v527 = vpop.f32.mrb[0].mxu0
          %528 = vmatprep.mubr.bf16.mxu0 0
          %529 = vmatmul.mubr.bf16.gmra.mrb[0].mxu0 %v332
          %v530 = vpop.f32.mrb[0].mxu0
          %v531 = vadd.f32 %v358, %v530
          %v532 = vpop.f32.mrb[0].mxu0
          %v533 = vpop.f32.mrb[0].mxu0
          %v534 = vadd.f32 %v358, %v533
          %v535 = vpop.f32.mrb[0].mxu0
          %536 = vmatprep.mubr.bf16.mxu0 0
          %537 = vmatmul.mubr.bf16.gmra.mrb[0].mxu0 %v333
          %v538 = vpop.f32.mrb[0].mxu0
          %v539 = vadd.f32 %v358, %v538
          %v540 = vpop.f32.mrb[0].mxu0
          %v541 = vpop.f32.mrb[0].mxu0
          %v542 = vadd.f32 %v358, %v541
          %v543 = vpop.f32.mrb[0].mxu0
          %544 = vmatprep.mubr.bf16.mxu0 0
          %545 = vmatmul.mubr.bf16.gmra.mrb[0].mxu0 %v334
          %v546 = vpop.f32.mrb[0].mxu0
          %v547 = vadd.f32 %v358, %v546
          %v548 = vpop.f32.mrb[0].mxu0
          %v549 = vpop.f32.mrb[0].mxu0
          %v550 = vadd.f32 %v358, %v549
          %v551 = vpop.f32.mrb[0].mxu0
          %552 = vmatprep.mubr.bf16.mxu0 0
          %553 = vmatmul.mubr.bf16.gmra.mrb[0].mxu0 %v335
          %v554 = vpop.f32.mrb[0].mxu0
          %v555 = vadd.f32 %v358, %v554
          %v556 = vpop.f32.mrb[0].mxu0
          %v557 = vpop.f32.mrb[0].mxu0
          %v558 = vadd.f32 %v358, %v557
          %v559 = vpop.f32.mrb[0].mxu0
          %560 = vmatprep.mubr.bf16.mxu0 0
          %561 = vmatmul.mubr.bf16.gmra.mrb[0].mxu0 %v336
          %v562 = vpop.f32.mrb[0].mxu0
          %v563 = vadd.f32 %v358, %v562
          %v564 = vpop.f32.mrb[0].mxu0
          %v565 = vpop.f32.mrb[0].mxu0
          %v566 = vadd.f32 %v358, %v565
          %v567 = vpop.f32.mrb[0].mxu0
          %568 = vdwg.mxu0
          %v569 = vpack.c.bf16 %v446, %v443
          %v570 = vpack.c.bf16 %v454, %v451
          %v571 = vpack.c.bf16 %v462, %v459
          %v572 = vpack.c.bf16 %v470, %v467
          %v573 = vpack.c.bf16 %v478, %v475
          %v574 = vpack.c.bf16 %v486, %v483
          %v575 = vpack.c.bf16 %v494, %v491
          %v576 = vpack.c.bf16 %v502, %v499
          %v577 = vpack.c.bf16 %v510, %v507
          %v578 = vpack.c.bf16 %v518, %v515
          %v579 = vpack.c.bf16 %v526, %v523
          %v580 = vpack.c.bf16 %v534, %v531
          %v581 = vpack.c.bf16 %v542, %v539
          %v582 = vpack.c.bf16 %v550, %v547
          %v583 = vpack.c.bf16 %v558, %v555
          %v584 = vpack.c.bf16 %v566, %v563
          %585 = vst [vmem:[#allocation2] sm:$0xff] %v569
          %586 = vst [vmem:[#allocation2 + $0x8] sm:$0xff] %v570
          %587 = vst [vmem:[#allocation2 + $0x10] sm:$0xff] %v571
          %588 = vst [vmem:[#allocation2 + $0x18] sm:$0xff] %v572
          %589 = vst [vmem:[#allocation2 + $0x20] sm:$0xff] %v573
          %590 = vst [vmem:[#allocation2 + $0x28] sm:$0xff] %v574
          %591 = vst [vmem:[#allocation2 + $0x30] sm:$0xff] %v575
          %592 = vst [vmem:[#allocation2 + $0x38] sm:$0xff] %v576
          %593 = vst [vmem:[#allocation2 + $0x40] sm:$0xff] %v577
          %594 = vst [vmem:[#allocation2 + $0x48] sm:$0xff] %v578
          %595 = vst [vmem:[#allocation2 + $0x50] sm:$0xff] %v579
          %596 = vst [vmem:[#allocation2 + $0x58] sm:$0xff] %v580
          %597 = vst [vmem:[#allocation2 + $0x60] sm:$0xff] %v581
          %598 = vst [vmem:[#allocation2 + $0x68] sm:$0xff] %v582
          %599 = vst [vmem:[#allocation2 + $0x70] sm:$0xff] %v583
          %600 = vst [vmem:[#allocation2 + $0x78] sm:$0xff] %v584
          %601 = vst [vmem:[#allocation3] sm:$0xff] 0.0
          %602 = vst [vmem:[#allocation3 + $0x8] sm:$0xff] 0.0
          %603 = vst [vmem:[#allocation3 + $0x10] sm:$0xff] 0.0
          %604 = vst [vmem:[#allocation3 + $0x18] sm:$0xff] 0.0
          %605 = vst [vmem:[#allocation3 + $0x20] sm:$0xff] 0.0
          %606 = vst [vmem:[#allocation3 + $0x28] sm:$0xff] 0.0
          %607 = vst [vmem:[#allocation3 + $0x30] sm:$0xff] 0.0
          %608 = vst [vmem:[#allocation3 + $0x38] sm:$0xff] 0.0
          %609 = vst [vmem:[#allocation3 + $0x40] sm:$0xff] 0.0
          %610 = vst [vmem:[#allocation3 + $0x48] sm:$0xff] 0.0
          %611 = vst [vmem:[#allocation3 + $0x50] sm:$0xff] 0.0
          %612 = vst [vmem:[#allocation3 + $0x58] sm:$0xff] 0.0
          %613 = vst [vmem:[#allocation3 + $0x60] sm:$0xff] 0.0
          %614 = vst [vmem:[#allocation3 + $0x68] sm:$0xff] 0.0
          %615 = vst [vmem:[#allocation3 + $0x70] sm:$0xff] 0.0
          %616 = vst [vmem:[#allocation3 + $0x78] sm:$0xff] 0.0
          %617 = vst [vmem:[#allocation3 + $0x80] sm:$0xff] 0.0
          %618 = vst [vmem:[#allocation3 + $0x88] sm:$0xff] 0.0
          %619 = vst [vmem:[#allocation3 + $0x90] sm:$0xff] 0.0
          %620 = vst [vmem:[#allocation3 + $0x98] sm:$0xff] 0.0
          %621 = vst [vmem:[#allocation3 + $0xa0] sm:$0xff] 0.0
          %622 = vst [vmem:[#allocation3 + $0xa8] sm:$0xff] 0.0
          %623 = vst [vmem:[#allocation3 + $0xb0] sm:$0xff] 0.0
          %624 = vst [vmem:[#allocation3 + $0xb8] sm:$0xff] 0.0
          %625 = vst [vmem:[#allocation3 + $0xc0] sm:$0xff] 0.0
          %626 = vst [vmem:[#allocation3 + $0xc8] sm:$0xff] 0.0
          %627 = vst [vmem:[#allocation3 + $0xd0] sm:$0xff] 0.0
          %628 = vst [vmem:[#allocation3 + $0xd8] sm:$0xff] 0.0
          %629 = vst [vmem:[#allocation3 + $0xe0] sm:$0xff] 0.0
          %630 = vst [vmem:[#allocation3 + $0xe8] sm:$0xff] 0.0
          %631 = vst [vmem:[#allocation3 + $0xf0] sm:$0xff] 0.0
          %632 = vst [vmem:[#allocation3 + $0xf8] sm:$0xff] 0.0
        $region56: #{tpu_custom_call.1} parent=39 // pred_fallthru
          _
        %s633 = smul.u32 %s28, 128
        %s634 = scalar_lea.vmem %s249, %s633 [#allocation4]
        %v635 = vld [vmem:[%s634] sm:$0xff]
        %v636 = vld [vmem:[%s634 + $0x8] sm:$0xff]
        %v637 = vld [vmem:[%s634 + $0x10] sm:$0xff]
        %v638 = vld [vmem:[%s634 + $0x18] sm:$0xff]
        %v639 = vld [vmem:[%s634 + $0x20] sm:$0xff]
        %v640 = vld [vmem:[%s634 + $0x28] sm:$0xff]
        %v641 = vld [vmem:[%s634 + $0x30] sm:$0xff]
        %v642 = vld [vmem:[%s634 + $0x38] sm:$0xff]
        %v643 = vld [vmem:[%s634 + $0x40] sm:$0xff]
        %v644 = vld [vmem:[%s634 + $0x48] sm:$0xff]
        %v645 = vld [vmem:[%s634 + $0x50] sm:$0xff]
        %v646 = vld [vmem:[%s634 + $0x58] sm:$0xff]
        %v647 = vld [vmem:[%s634 + $0x60] sm:$0xff]
        %v648 = vld [vmem:[%s634 + $0x68] sm:$0xff]
        %v649 = vld [vmem:[%s634 + $0x70] sm:$0xff]
        %v650 = vld [vmem:[%s634 + $0x78] sm:$0xff]
        %v651 = vpack.c.bf16 %v636, %v635
        %v652 = vpack.c.bf16 %v638, %v637
        %v653 = vpack.c.bf16 %v640, %v639
        %v654 = vpack.c.bf16 %v642, %v641
        %v655 = vpack.c.bf16 %v644, %v643
        %v656 = vpack.c.bf16 %v646, %v645
        %v657 = vpack.c.bf16 %v648, %v647
        %v658 = vpack.c.bf16 %v650, %v649
        %v659 = vld [vmem:[#allocation7 + $0x4] sm:$0xff]
        %v660 = vld [vmem:[#allocation7 + $0x10] sm:$0xff]
        %v661 = vld [vmem:[#allocation7 + $0x1c] sm:$0xff]
        %v662 = vld [vmem:[#allocation7 + $0x28] sm:$0xff]
        %v663 = vld [vmem:[#allocation7 + $0x34] sm:$0xff]
        %v664 = vld [vmem:[#allocation7 + $0x40] sm:$0xff]
        %v665 = vld [vmem:[#allocation7 + $0x4c] sm:$0xff]
        %v666 = vld [vmem:[#allocation7 + $0x58] sm:$0xff]
        %v667 = vld [vmem:[#allocation7 + $0x64] sm:$0xff]
        %v668 = vld [vmem:[#allocation7 + $0x70] sm:$0xff]
        %v669 = vld [vmem:[#allocation7 + $0x7c] sm:$0xff]
        %v670 = vld [vmem:[#allocation7 + $0x88] sm:$0xff]
        %v671 = vld [vmem:[#allocation7 + $0x94] sm:$0xff]
        %v672 = vld [vmem:[#allocation7 + $0xa0] sm:$0xff]
        %v673 = vld [vmem:[#allocation7 + $0xac] sm:$0xff]
        %v674 = vld [vmem:[#allocation7 + $0xb8] sm:$0xff]
        %v675 = vld [vmem:[%s2 + $0x1] sm:$0x3]
        %v677 = vlaneseq
        %v678 = vshrl.u32 %v677, 7
        %v679 = vsub.s32 0, %v678
        %v680 = vrot.slane %v675, %v679
        %v681 = vlaneseq
        %v682 = vshrl.u32 %v681, 7
        %v683 = vsub.s32 1, %v682
        %v684 = vrot.slane %v675, %v683
        %v703 = vunpack.c.l.b16 %v659
        %v704 = vunpack.c.h.b16 %v659
        %v705 = vunpack.c.l.b16 %v660
        %v706 = vunpack.c.h.b16 %v660
        %v707 = vunpack.c.l.b16 %v661
        %v708 = vunpack.c.h.b16 %v661
        %v709 = vunpack.c.l.b16 %v662
        %v710 = vunpack.c.h.b16 %v662
        %v711 = vunpack.c.l.b16 %v663
        %v712 = vunpack.c.h.b16 %v663
        %v713 = vunpack.c.l.b16 %v664
        %v714 = vunpack.c.h.b16 %v664
        %v715 = vunpack.c.l.b16 %v665
        %v716 = vunpack.c.h.b16 %v665
        %v717 = vunpack.c.l.b16 %v666
        %v718 = vunpack.c.h.b16 %v666
        %v719 = vunpack.c.l.b16 %v667
        %v720 = vunpack.c.h.b16 %v667
        %v721 = vunpack.c.l.b16 %v668
        %v722 = vunpack.c.h.b16 %v668
        %v723 = vunpack.c.l.b16 %v669
        %v724 = vunpack.c.h.b16 %v669
        %v725 = vunpack.c.l.b16 %v670
        %v726 = vunpack.c.h.b16 %v670
        %v727 = vunpack.c.l.b16 %v671
        %v728 = vunpack.c.h.b16 %v671
        %v729 = vunpack.c.l.b16 %v672
        %v730 = vunpack.c.h.b16 %v672
        %v731 = vunpack.c.l.b16 %v673
        %v732 = vunpack.c.h.b16 %v673
        %v733 = vunpack.c.l.b16 %v674
        %v734 = vunpack.c.h.b16 %v674
        %v735 = vpack.c.b16 %v705, %v703
        %v736 = vpack.c.b16 %v706, %v704
        %v737 = vpack.c.b16 %v709, %v707
        %v738 = vpack.c.b16 %v710, %v708
        %v739 = vpack.c.b16 %v713, %v711
        %v740 = vpack.c.b16 %v714, %v712
        %v741 = vpack.c.b16 %v717, %v715
        %v742 = vpack.c.b16 %v718, %v716
        %v743 = vpack.c.b16 %v721, %v719
        %v744 = vpack.c.b16 %v722, %v720
        %v745 = vpack.c.b16 %v725, %v723
        %v746 = vpack.c.b16 %v726, %v724
        %v747 = vpack.c.b16 %v729, %v727
        %v748 = vpack.c.b16 %v730, %v728
        %v749 = vpack.c.b16 %v733, %v731
        %v750 = vpack.c.b16 %v734, %v732
        %767 = vmatprep.subr.bf16.mxu0 %v736
        %768 = vmatpush1.bf16.msra.mxu0 %v735
        %769 = vmatprep.subr.bf16.mxu0 %v738
        %770 = vmatpush1.bf16.msra.mxu0 %v737
        %771 = vmatprep.subr.bf16.mxu0 %v740
        %772 = vmatpush1.bf16.msra.mxu0 %v739
        %773 = vmatprep.subr.bf16.mxu0 %v742
        %774 = vmatpush1.bf16.msra.mxu0 %v741
        %775 = vmatprep.subr.bf16.mxu0 %v744
        %776 = vmatpush1.bf16.msra.mxu0 %v743
        %777 = vmatprep.subr.bf16.mxu0 %v746
        %778 = vmatpush1.bf16.msra.mxu0 %v745
        %779 = vmatprep.subr.bf16.mxu0 %v748
        %780 = vmatpush1.bf16.msra.mxu0 %v747
        %781 = vmatprep.subr.bf16.mxu0 %v750
        %782 = vmatpush1.bf16.msra.mxu0 %v749
        %783 = vmatprep.subr.bf16.mxu0 0
        %784 = vmatpush1.bf16.msra.mxu0 0
        %785 = vmatprep.subr.bf16.mxu0 0
        %786 = vmatpush1.bf16.msra.mxu0 0
        %787 = vmatprep.subr.bf16.mxu0 0
        %788 = vmatpush1.bf16.msra.mxu0 0
        %789 = vmatprep.subr.bf16.mxu0 0
        %790 = vmatpush1.bf16.msra.mxu0 0
        %791 = vmatprep.subr.bf16.mxu0 0
        %792 = vmatpush1.bf16.msra.mxu0 0
        %793 = vmatprep.subr.bf16.mxu0 0
        %794 = vmatpush1.bf16.msra.mxu0 0
        %795 = vmatprep.subr.bf16.mxu0 0
        %796 = vmatpush1.bf16.msra.mxu0 0
        %797 = vmatprep.subr.bf16.mxu0 0
        %798 = vmatpush1.bf16.msra.mxu0 0
        %799 = vmatprep.mubr.bf16.mxu0 0
        %800 = vmatmul.mubr.bf16.gmra.mrb[0].mxu0 %v651
        %v801 = vpop.f32.mrb[0].mxu0
        %v802 = vadd.f32 %v680, %v801
        %v803 = vpop.f32.mrb[0].mxu0
        %v804 = vadd.f32 %v684, %v803
        %v805 = vpop.f32.mrb[0].mxu0
        %v806 = vadd.f32 %v680, %v805
        %v807 = vpop.f32.mrb[0].mxu0
        %v808 = vadd.f32 %v684, %v807
        %809 = vmatprep.mubr.bf16.mxu0 0
        %810 = vmatmul.mubr.bf16.gmra.mrb[0].mxu0 %v652
        %v811 = vpop.f32.mrb[0].mxu0
        %v812 = vadd.f32 %v680, %v811
        %v813 = vpop.f32.mrb[0].mxu0
        %v814 = vadd.f32 %v684, %v813
        %v815 = vpop.f32.mrb[0].mxu0
        %v816 = vadd.f32 %v680, %v815
        %v817 = vpop.f32.mrb[0].mxu0
        %v818 = vadd.f32 %v684, %v817
        %819 = vmatprep.mubr.bf16.mxu0 0
        %820 = vmatmul.mubr.bf16.gmra.mrb[0].mxu0 %v653
        %v821 = vpop.f32.mrb[0].mxu0
        %v822 = vadd.f32 %v680, %v821
        %v823 = vpop.f32.mrb[0].mxu0
        %v824 = vadd.f32 %v684, %v823
        %v825 = vpop.f32.mrb[0].mxu0
        %v826 = vadd.f32 %v680, %v825
        %v827 = vpop.f32.mrb[0].mxu0
        %v828 = vadd.f32 %v684, %v827
        %829 = vmatprep.mubr.bf16.mxu0 0
        %830 = vmatmul.mubr.bf16.gmra.mrb[0].mxu0 %v654
        %v831 = vpop.f32.mrb[0].mxu0
        %v832 = vadd.f32 %v680, %v831
        %v833 = vpop.f32.mrb[0].mxu0
        %v834 = vadd.f32 %v684, %v833
        %v835 = vpop.f32.mrb[0].mxu0
        %v836 = vadd.f32 %v680, %v835
        %v837 = vpop.f32.mrb[0].mxu0
        %v838 = vadd.f32 %v684, %v837
        %839 = vmatprep.mubr.bf16.mxu0 0
        %840 = vmatmul.mubr.bf16.gmra.mrb[0].mxu0 %v655
        %v841 = vpop.f32.mrb[0].mxu0
        %v842 = vadd.f32 %v680, %v841
        %v843 = vpop.f32.mrb[0].mxu0
        %v844 = vadd.f32 %v684, %v843
        %v845 = vpop.f32.mrb[0].mxu0
        %v846 = vadd.f32 %v680, %v845
        %v847 = vpop.f32.mrb[0].mxu0
        %v848 = vadd.f32 %v684, %v847
        %849 = vmatprep.mubr.bf16.mxu0 0
        %850 = vmatmul.mubr.bf16.gmra.mrb[0].mxu0 %v656
        %v851 = vpop.f32.mrb[0].mxu0
        %v852 = vadd.f32 %v680, %v851
        %v853 = vpop.f32.mrb[0].mxu0
        %v854 = vadd.f32 %v684, %v853
        %v855 = vpop.f32.mrb[0].mxu0
        %v856 = vadd.f32 %v680, %v855
        %v857 = vpop.f32.mrb[0].mxu0
        %v858 = vadd.f32 %v684, %v857
        %859 = vmatprep.mubr.bf16.mxu0 0
        %860 = vmatmul.mubr.bf16.gmra.mrb[0].mxu0 %v657
        %v861 = vpop.f32.mrb[0].mxu0
        %v862 = vadd.f32 %v680, %v861
        %v863 = vpop.f32.mrb[0].mxu0
        %v864 = vadd.f32 %v684, %v863
        %v865 = vpop.f32.mrb[0].mxu0
        %v866 = vadd.f32 %v680, %v865
        %v867 = vpop.f32.mrb[0].mxu0
        %v868 = vadd.f32 %v684, %v867
        %869 = vmatprep.mubr.bf16.mxu0 0
        %870 = vmatmul.mubr.bf16.gmra.mrb[0].mxu0 %v658
        %v871 = vpop.f32.mrb[0].mxu0
        %v872 = vadd.f32 %v680, %v871
        %v873 = vpop.f32.mrb[0].mxu0
        %v874 = vadd.f32 %v684, %v873
        %v875 = vpop.f32.mrb[0].mxu0
        %v876 = vadd.f32 %v680, %v875
        %v877 = vpop.f32.mrb[0].mxu0
        %v878 = vadd.f32 %v684, %v877
        %879 = vdwg.mxu0
        %v880 = vpack.c.bf16 %v806, %v802
        %v881 = vpack.c.bf16 %v816, %v812
        %v882 = vpack.c.bf16 %v826, %v822
        %v883 = vpack.c.bf16 %v836, %v832
        %v884 = vpack.c.bf16 %v846, %v842
        %v885 = vpack.c.bf16 %v856, %v852
        %v886 = vpack.c.bf16 %v866, %v862
        %v887 = vpack.c.bf16 %v876, %v872
        %v888 = vpack.c.bf16 %v808, %v804
        %v889 = vpack.c.bf16 %v818, %v814
        %v890 = vpack.c.bf16 %v828, %v824
        %v891 = vpack.c.bf16 %v838, %v834
        %v892 = vpack.c.bf16 %v848, %v844
        %v893 = vpack.c.bf16 %v858, %v854
        %v894 = vpack.c.bf16 %v868, %v864
        %v895 = vpack.c.bf16 %v878, %v874
        %v896 = vld [vmem:[#allocation2] sm:$0xff]
        %v897 = vld [vmem:[#allocation2 + $0x8] sm:$0xff]
        %v898 = vld [vmem:[#allocation2 + $0x10] sm:$0xff]
        %v899 = vld [vmem:[#allocation2 + $0x18] sm:$0xff]
        %v900 = vld [vmem:[#allocation2 + $0x20] sm:$0xff]
        %v901 = vld [vmem:[#allocation2 + $0x28] sm:$0xff]
        %v902 = vld [vmem:[#allocation2 + $0x30] sm:$0xff]
        %v903 = vld [vmem:[#allocation2 + $0x38] sm:$0xff]
        %v904 = vld [vmem:[#allocation2 + $0x40] sm:$0xff]
        %v905 = vld [vmem:[#allocation2 + $0x48] sm:$0xff]
        %v906 = vld [vmem:[#allocation2 + $0x50] sm:$0xff]
        %v907 = vld [vmem:[#allocation2 + $0x58] sm:$0xff]
        %v908 = vld [vmem:[#allocation2 + $0x60] sm:$0xff]
        %v909 = vld [vmem:[#allocation2 + $0x68] sm:$0xff]
        %v910 = vld [vmem:[#allocation2 + $0x70] sm:$0xff]
        %v911 = vld [vmem:[#allocation2 + $0x78] sm:$0xff]
        %912 = vmatprep.subr.bf16.mxu0 0
        %913 = vmatpush1.bf16.xpose.msra.mxu0 %v888
        %914 = vmatprep.subr.bf16.mxu0 0
        %915 = vmatpush1.bf16.xpose.msra.mxu0 %v889
        %916 = vmatprep.subr.bf16.mxu0 0
        %917 = vmatpush1.bf16.xpose.msra.mxu0 %v890
        %918 = vmatprep.subr.bf16.mxu0 0
        %919 = vmatpush1.bf16.xpose.msra.mxu0 %v891
        %920 = vmatprep.subr.bf16.mxu0 0
        %921 = vmatpush1.bf16.xpose.msra.mxu0 %v892
        %922 = vmatprep.subr.bf16.mxu0 0
        %923 = vmatpush1.bf16.xpose.msra.mxu0 %v893
        %924 = vmatprep.subr.bf16.mxu0 0
        %925 = vmatpush1.bf16.xpose.msra.mxu0 %v894
        %926 = vmatprep.subr.bf16.mxu0 0
        %927 = vmatpush1.bf16.xpose.msra.mxu0 %v895
        %928 = vmatprep.subr.bf16.mxu0 0
        %929 = vmatpush1.bf16.xpose.msra.mxu0 0
        %930 = vmatprep.subr.bf16.mxu0 0
        %931 = vmatpush1.bf16.xpose.msra.mxu0 0
        %932 = vmatprep.subr.bf16.mxu0 0
        %933 = vmatpush1.bf16.xpose.msra.mxu0 0
        %934 = vmatprep.subr.bf16.mxu0 0
        %935 = vmatpush1.bf16.xpose.msra.mxu0 0
        %936 = vmatprep.subr.bf16.mxu0 0
        %937 = vmatpush1.bf16.xpose.msra.mxu0 0
        %938 = vmatprep.subr.bf16.mxu0 0
        %939 = vmatpush1.bf16.xpose.msra.mxu0 0
        %940 = vmatprep.subr.bf16.mxu0 0
        %941 = vmatpush1.bf16.xpose.msra.mxu0 0
        %942 = vmatprep.subr.bf16.mxu0 0
        %943 = vmatpush1.bf16.xpose.msra.mxu0 0
        %944 = vmatprep.mubr.bf16.mxu0 0
        %945 = vmatmul.mubr.bf16.gmra.mrb[0].mxu0 %v896
        %v946 = vpop.f32.mrb[0].mxu0
        %v947 = vadd.f32 0.0, %v946
        %v948 = vpop.f32.mrb[0].mxu0
        %v949 = vpop.f32.mrb[0].mxu0
        %v950 = vadd.f32 0.0, %v949
        %v951 = vpop.f32.mrb[0].mxu0
        %952 = vmatprep.mubr.bf16.mxu0 0
        %953 = vmatmul.mubr.bf16.gmra.mrb[0].mxu0 %v897
        %v954 = vpop.f32.mrb[0].mxu0
        %v955 = vadd.f32 0.0, %v954
        %v956 = vpop.f32.mrb[0].mxu0
        %v957 = vpop.f32.mrb[0].mxu0
        %v958 = vadd.f32 0.0, %v957
        %v959 = vpop.f32.mrb[0].mxu0
        %960 = vmatprep.mubr.bf16.mxu0 0
        %961 = vmatmul.mubr.bf16.gmra.mrb[0].mxu0 %v898
        %v962 = vpop.f32.mrb[0].mxu0
        %v963 = vadd.f32 0.0, %v962
        %v964 = vpop.f32.mrb[0].mxu0
        %v965 = vpop.f32.mrb[0].mxu0
        %v966 = vadd.f32 0.0, %v965
        %v967 = vpop.f32.mrb[0].mxu0
        %968 = vmatprep.mubr.bf16.mxu0 0
        %969 = vmatmul.mubr.bf16.gmra.mrb[0].mxu0 %v899
        %v970 = vpop.f32.mrb[0].mxu0
        %v971 = vadd.f32 0.0, %v970
        %v972 = vpop.f32.mrb[0].mxu0
        %v973 = vpop.f32.mrb[0].mxu0
        %v974 = vadd.f32 0.0, %v973
        %v975 = vpop.f32.mrb[0].mxu0
        %976 = vmatprep.mubr.bf16.mxu0 0
        %977 = vmatmul.mubr.bf16.gmra.mrb[0].mxu0 %v900
        %v978 = vpop.f32.mrb[0].mxu0
        %v979 = vadd.f32 0.0, %v978
        %v980 = vpop.f32.mrb[0].mxu0
        %v981 = vpop.f32.mrb[0].mxu0
        %v982 = vadd.f32 0.0, %v981
        %v983 = vpop.f32.mrb[0].mxu0
        %984 = vmatprep.mubr.bf16.mxu0 0
        %985 = vmatmul.mubr.bf16.gmra.mrb[0].mxu0 %v901
        %v986 = vpop.f32.mrb[0].mxu0
        %v987 = vadd.f32 0.0, %v986
        %v988 = vpop.f32.mrb[0].mxu0
        %v989 = vpop.f32.mrb[0].mxu0
        %v990 = vadd.f32 0.0, %v989
        %v991 = vpop.f32.mrb[0].mxu0
        %992 = vmatprep.mubr.bf16.mxu0 0
        %993 = vmatmul.mubr.bf16.gmra.mrb[0].mxu0 %v902
        %v994 = vpop.f32.mrb[0].mxu0
        %v995 = vadd.f32 0.0, %v994
        %v996 = vpop.f32.mrb[0].mxu0
        %v997 = vpop.f32.mrb[0].mxu0
        %v998 = vadd.f32 0.0, %v997
        %v999 = vpop.f32.mrb[0].mxu0
        %1000 = vmatprep.mubr.bf16.mxu0 0
        %1001 = vmatmul.mubr.bf16.gmra.mrb[0].mxu0 %v903
        %v1002 = vpop.f32.mrb[0].mxu0
        %v1003 = vadd.f32 0.0, %v1002
        %v1004 = vpop.f32.mrb[0].mxu0
        %v1005 = vpop.f32.mrb[0].mxu0
        %v1006 = vadd.f32 0.0, %v1005
        %v1007 = vpop.f32.mrb[0].mxu0
        %1008 = vmatprep.mubr.bf16.mxu0 0
        %1009 = vmatmul.mubr.bf16.gmra.mrb[0].mxu0 %v904
        %v1010 = vpop.f32.mrb[0].mxu0
        %v1011 = vadd.f32 0.0, %v1010
        %v1012 = vpop.f32.mrb[0].mxu0
        %v1013 = vpop.f32.mrb[0].mxu0
        %v1014 = vadd.f32 0.0, %v1013
        %v1015 = vpop.f32.mrb[0].mxu0
        %1016 = vmatprep.mubr.bf16.mxu0 0
        %1017 = vmatmul.mubr.bf16.gmra.mrb[0].mxu0 %v905
        %v1018 = vpop.f32.mrb[0].mxu0
        %v1019 = vadd.f32 0.0, %v1018
        %v1020 = vpop.f32.mrb[0].mxu0
        %v1021 = vpop.f32.mrb[0].mxu0
        %v1022 = vadd.f32 0.0, %v1021
        %v1023 = vpop.f32.mrb[0].mxu0
        %1024 = vmatprep.mubr.bf16.mxu0 0
        %1025 = vmatmul.mubr.bf16.gmra.mrb[0].mxu0 %v906
        %v1026 = vpop.f32.mrb[0].mxu0
        %v1027 = vadd.f32 0.0, %v1026
        %v1028 = vpop.f32.mrb[0].mxu0
        %v1029 = vpop.f32.mrb[0].mxu0
        %v1030 = vadd.f32 0.0, %v1029
        %v1031 = vpop.f32.mrb[0].mxu0
        %1032 = vmatprep.mubr.bf16.mxu0 0
        %1033 = vmatmul.mubr.bf16.gmra.mrb[0].mxu0 %v907
        %v1034 = vpop.f32.mrb[0].mxu0
        %v1035 = vadd.f32 0.0, %v1034
        %v1036 = vpop.f32.mrb[0].mxu0
        %v1037 = vpop.f32.mrb[0].mxu0
        %v1038 = vadd.f32 0.0, %v1037
        %v1039 = vpop.f32.mrb[0].mxu0
        %1040 = vmatprep.mubr.bf16.mxu0 0
        %1041 = vmatmul.mubr.bf16.gmra.mrb[0].mxu0 %v908
        %v1042 = vpop.f32.mrb[0].mxu0
        %v1043 = vadd.f32 0.0, %v1042
        %v1044 = vpop.f32.mrb[0].mxu0
        %v1045 = vpop.f32.mrb[0].mxu0
        %v1046 = vadd.f32 0.0, %v1045
        %v1047 = vpop.f32.mrb[0].mxu0
        %1048 = vmatprep.mubr.bf16.mxu0 0
        %1049 = vmatmul.mubr.bf16.gmra.mrb[0].mxu0 %v909
        %v1050 = vpop.f32.mrb[0].mxu0
        %v1051 = vadd.f32 0.0, %v1050
        %v1052 = vpop.f32.mrb[0].mxu0
        %v1053 = vpop.f32.mrb[0].mxu0
        %v1054 = vadd.f32 0.0, %v1053
        %v1055 = vpop.f32.mrb[0].mxu0
        %1056 = vmatprep.mubr.bf16.mxu0 0
        %1057 = vmatmul.mubr.bf16.gmra.mrb[0].mxu0 %v910
        %v1058 = vpop.f32.mrb[0].mxu0
        %v1059 = vadd.f32 0.0, %v1058
        %v1060 = vpop.f32.mrb[0].mxu0
        %v1061 = vpop.f32.mrb[0].mxu0
        %v1062 = vadd.f32 0.0, %v1061
        %v1063 = vpop.f32.mrb[0].mxu0
        %1064 = vmatprep.mubr.bf16.mxu0 0
        %1065 = vmatmul.mubr.bf16.gmra.mrb[0].mxu0 %v911
        %v1066 = vpop.f32.mrb[0].mxu0
        %v1067 = vadd.f32 0.0, %v1066
        %v1068 = vpop.f32.mrb[0].mxu0
        %v1069 = vpop.f32.mrb[0].mxu0
        %v1070 = vadd.f32 0.0, %v1069
        %v1071 = vpop.f32.mrb[0].mxu0
        %1072 = vdwg.mxu0
        %v1073 = vmax.f32 %v947, %v963
        %v1074 = vmax.f32 %v950, %v966
        %v1075 = vmax.f32 %v955, %v971
        %v1076 = vmax.f32 %v958, %v974
        %v1077 = vmax.f32 %v1073, %v979
        %v1078 = vmax.f32 %v1074, %v982
        %v1079 = vmax.f32 %v1075, %v987
        %v1080 = vmax.f32 %v1076, %v990
        %v1081 = vmax.f32 %v1077, %v995
        %v1082 = vmax.f32 %v1078, %v998
        %v1083 = vmax.f32 %v1079, %v1003
        %v1084 = vmax.f32 %v1080, %v1006
        %v1085 = vmax.f32 %v1081, %v1011
        %v1086 = vmax.f32 %v1082, %v1014
        %v1087 = vmax.f32 %v1083, %v1019
        %v1088 = vmax.f32 %v1084, %v1022
        %v1089 = vmax.f32 %v1085, %v1027
        %v1090 = vmax.f32 %v1086, %v1030
        %v1091 = vmax.f32 %v1087, %v1035
        %v1092 = vmax.f32 %v1088, %v1038
        %v1093 = vmax.f32 %v1089, %v1043
        %v1094 = vmax.f32 %v1090, %v1046
        %v1095 = vmax.f32 %v1091, %v1051
        %v1096 = vmax.f32 %v1092, %v1054
        %v1097 = vmax.f32 %v1093, %v1059
        %v1098 = vmax.f32 %v1094, %v1062
        %v1099 = vmax.f32 %v1095, %v1067
        %v1100 = vmax.f32 %v1096, %v1070
        %v1101 = vmax.f32 %v1097, %v1098
        %v1102 = vmax.f32 %v1099, %v1100
        %v1103 = vmax.f32 %v1101, %v1102
        %v1104 = vrot.slane %v1103, 4
        %v1105 = vmax.f32 %v1103, %v1104
        %v1106 = vrot.slane %v1105, 2
        %v1107 = vmax.f32 %v1105, %v1106
        %v1108 = vrot.slane %v1107, 1
        %v1109 = vmax.f32 %v1107, %v1108
        %v1110 = vsub.f32 %v947, %v1109
        %v1111 = vsub.f32 %v950, %v1109
        %v1112 = vsub.f32 %v955, %v1109
        %v1113 = vsub.f32 %v958, %v1109
        %v1114 = vsub.f32 %v963, %v1109
        %v1115 = vsub.f32 %v966, %v1109
        %v1116 = vsub.f32 %v971, %v1109
        %v1117 = vsub.f32 %v974, %v1109
        %v1118 = vsub.f32 %v979, %v1109
        %v1119 = vsub.f32 %v982, %v1109
        %v1120 = vsub.f32 %v987, %v1109
        %v1121 = vsub.f32 %v990, %v1109
        %v1122 = vsub.f32 %v995, %v1109
        %v1123 = vsub.f32 %v998, %v1109
        %v1124 = vsub.f32 %v1003, %v1109
        %v1125 = vsub.f32 %v1006, %v1109
        %v1126 = vsub.f32 %v1011, %v1109
        %v1127 = vsub.f32 %v1014, %v1109
        %v1128 = vsub.f32 %v1019, %v1109
        %v1129 = vsub.f32 %v1022, %v1109
        %v1130 = vsub.f32 %v1027, %v1109
        %v1131 = vsub.f32 %v1030, %v1109
        %v1132 = vsub.f32 %v1035, %v1109
        %v1133 = vsub.f32 %v1038, %v1109
        %v1134 = vsub.f32 %v1043, %v1109
        %v1135 = vsub.f32 %v1046, %v1109
        %v1136 = vsub.f32 %v1051, %v1109
        %v1137 = vsub.f32 %v1054, %v1109
        %v1138 = vsub.f32 %v1059, %v1109
        %v1139 = vsub.f32 %v1062, %v1109
        %v1140 = vsub.f32 %v1067, %v1109
        %v1141 = vsub.f32 %v1070, %v1109
        %v1142 = vmul.f32 %v1110, 1.442695
        %v1143 = vpow.pop %v1142
        %v1144 = vmul.f32 %v1111, 1.442695
        %v1145 = vpow.pop %v1144
        %v1146 = vmul.f32 %v1112, 1.442695
        %v1147 = vpow.pop %v1146
        %v1148 = vmul.f32 %v1113, 1.442695
        %v1149 = vpow.pop %v1148
        %v1150 = vmul.f32 %v1114, 1.442695
        %v1151 = vpow.pop %v1150
        %v1152 = vmul.f32 %v1115, 1.442695
        %v1153 = vpow.pop %v1152
        %v1154 = vmul.f32 %v1116, 1.442695
        %v1155 = vpow.pop %v1154
        %v1156 = vmul.f32 %v1117, 1.442695
        %v1157 = vpow.pop %v1156
        %v1158 = vmul.f32 %v1118, 1.442695
        %v1159 = vpow.pop %v1158
        %v1160 = vmul.f32 %v1119, 1.442695
        %v1161 = vpow.pop %v1160
        %v1162 = vmul.f32 %v1120, 1.442695
        %v1163 = vpow.pop %v1162
        %v1164 = vmul.f32 %v1121, 1.442695
        %v1165 = vpow.pop %v1164
        %v1166 = vmul.f32 %v1122, 1.442695
        %v1167 = vpow.pop %v1166
        %v1168 = vmul.f32 %v1123, 1.442695
        %v1169 = vpow.pop %v1168
        %v1170 = vmul.f32 %v1124, 1.442695
        %v1171 = vpow.pop %v1170
        %v1172 = vmul.f32 %v1125, 1.442695
        %v1173 = vpow.pop %v1172
        %v1174 = vmul.f32 %v1126, 1.442695
        %v1175 = vpow.pop %v1174
        %v1176 = vmul.f32 %v1127, 1.442695
        %v1177 = vpow.pop %v1176
        %v1178 = vmul.f32 %v1128, 1.442695
        %v1179 = vpow.pop %v1178
        %v1180 = vmul.f32 %v1129, 1.442695
        %v1181 = vpow.pop %v1180
        %v1182 = vmul.f32 %v1130, 1.442695
        %v1183 = vpow.pop %v1182
        %v1184 = vmul.f32 %v1131, 1.442695
        %v1185 = vpow.pop %v1184
        %v1186 = vmul.f32 %v1132, 1.442695
        %v1187 = vpow.pop %v1186
        %v1188 = vmul.f32 %v1133, 1.442695
        %v1189 = vpow.pop %v1188
        %v1190 = vmul.f32 %v1134, 1.442695
        %v1191 = vpow.pop %v1190
        %v1192 = vmul.f32 %v1135, 1.442695
        %v1193 = vpow.pop %v1192
        %v1194 = vmul.f32 %v1136, 1.442695
        %v1195 = vpow.pop %v1194
        %v1196 = vmul.f32 %v1137, 1.442695
        %v1197 = vpow.pop %v1196
        %v1198 = vmul.f32 %v1138, 1.442695
        %v1199 = vpow.pop %v1198
        %v1200 = vmul.f32 %v1139, 1.442695
        %v1201 = vpow.pop %v1200
        %v1202 = vmul.f32 %v1140, 1.442695
        %v1203 = vpow.pop %v1202
        %v1204 = vmul.f32 %v1141, 1.442695
        %v1205 = vpow.pop %v1204
        %v1206 = vadd.f32 %v1143, %v1145
        %v1207 = vadd.f32 %v1206, %v1147
        %v1208 = vadd.f32 %v1207, %v1149
        %v1209 = vadd.f32 %v1208, %v1151
        %v1210 = vadd.f32 %v1209, %v1153
        %v1211 = vadd.f32 %v1210, %v1155
        %v1212 = vadd.f32 %v1211, %v1157
        %v1213 = vadd.f32 %v1212, %v1159
        %v1214 = vadd.f32 %v1213, %v1161
        %v1215 = vadd.f32 %v1214, %v1163
        %v1216 = vadd.f32 %v1215, %v1165
        %v1217 = vadd.f32 %v1216, %v1167
        %v1218 = vadd.f32 %v1217, %v1169
        %v1219 = vadd.f32 %v1218, %v1171
        %v1220 = vadd.f32 %v1219, %v1173
        %v1221 = vadd.f32 %v1220, %v1175
        %v1222 = vadd.f32 %v1221, %v1177
        %v1223 = vadd.f32 %v1222, %v1179
        %v1224 = vadd.f32 %v1223, %v1181
        %v1225 = vadd.f32 %v1224, %v1183
        %v1226 = vadd.f32 %v1225, %v1185
        %v1227 = vadd.f32 %v1226, %v1187
        %v1228 = vadd.f32 %v1227, %v1189
        %v1229 = vadd.f32 %v1228, %v1191
        %v1230 = vadd.f32 %v1229, %v1193
        %v1231 = vadd.f32 %v1230, %v1195
        %v1232 = vadd.f32 %v1231, %v1197
        %v1233 = vadd.f32 %v1232, %v1199
        %v1234 = vadd.f32 %v1233, %v1201
        %v1235 = vadd.f32 %v1234, %v1203
        %v1236 = vadd.f32 %v1235, %v1205
        %v1237 = vrot.slane %v1236, 4
        %v1238 = vadd.f32 %v1236, %v1237
        %v1239 = vrot.slane %v1238, 2
        %v1240 = vadd.f32 %v1238, %v1239
        %v1241 = vrot.slane %v1240, 1
        %v1242 = vadd.f32 %v1240, %v1241
        %v1243 = vrcp.pop %v1242
        %v1244 = vmul.f32 %v1143, %v1243
        %v1245 = vmul.f32 %v1145, %v1243
        %v1246 = vmul.f32 %v1147, %v1243
        %v1247 = vmul.f32 %v1149, %v1243
        %v1248 = vmul.f32 %v1151, %v1243
        %v1249 = vmul.f32 %v1153, %v1243
        %v1250 = vmul.f32 %v1155, %v1243
        %v1251 = vmul.f32 %v1157, %v1243
        %v1252 = vmul.f32 %v1159, %v1243
        %v1253 = vmul.f32 %v1161, %v1243
        %v1254 = vmul.f32 %v1163, %v1243
        %v1255 = vmul.f32 %v1165, %v1243
        %v1256 = vmul.f32 %v1167, %v1243
        %v1257 = vmul.f32 %v1169, %v1243
        %v1258 = vmul.f32 %v1171, %v1243
        %v1259 = vmul.f32 %v1173, %v1243
        %v1260 = vmul.f32 %v1175, %v1243
        %v1261 = vmul.f32 %v1177, %v1243
        %v1262 = vmul.f32 %v1179, %v1243
        %v1263 = vmul.f32 %v1181, %v1243
        %v1264 = vmul.f32 %v1183, %v1243
        %v1265 = vmul.f32 %v1185, %v1243
        %v1266 = vmul.f32 %v1187, %v1243
        %v1267 = vmul.f32 %v1189, %v1243
        %v1268 = vmul.f32 %v1191, %v1243
        %v1269 = vmul.f32 %v1193, %v1243
        %v1270 = vmul.f32 %v1195, %v1243
        %v1271 = vmul.f32 %v1197, %v1243
        %v1272 = vmul.f32 %v1199, %v1243
        %v1273 = vmul.f32 %v1201, %v1243
        %v1274 = vmul.f32 %v1203, %v1243
        %v1275 = vmul.f32 %v1205, %v1243
        %v1276 = vld [vmem:[#allocation3] sm:$0xff]
        %v1277 = vld [vmem:[#allocation3 + $0x8] sm:$0xff]
        %v1278 = vld [vmem:[#allocation3 + $0x10] sm:$0xff]
        %v1279 = vld [vmem:[#allocation3 + $0x18] sm:$0xff]
        %v1280 = vld [vmem:[#allocation3 + $0x20] sm:$0xff]
        %v1281 = vld [vmem:[#allocation3 + $0x28] sm:$0xff]
        %v1282 = vld [vmem:[#allocation3 + $0x30] sm:$0xff]
        %v1283 = vld [vmem:[#allocation3 + $0x38] sm:$0xff]
        %v1284 = vld [vmem:[#allocation3 + $0x40] sm:$0xff]
        %v1285 = vld [vmem:[#allocation3 + $0x48] sm:$0xff]
        %v1286 = vld [vmem:[#allocation3 + $0x50] sm:$0xff]
        %v1287 = vld [vmem:[#allocation3 + $0x58] sm:$0xff]
        %v1288 = vld [vmem:[#allocation3 + $0x60] sm:$0xff]
        %v1289 = vld [vmem:[#allocation3 + $0x68] sm:$0xff]
        %v1290 = vld [vmem:[#allocation3 + $0x70] sm:$0xff]
        %v1291 = vld [vmem:[#allocation3 + $0x78] sm:$0xff]
        %v1292 = vld [vmem:[#allocation3 + $0x80] sm:$0xff]
        %v1293 = vld [vmem:[#allocation3 + $0x88] sm:$0xff]
        %v1294 = vld [vmem:[#allocation3 + $0x90] sm:$0xff]
        %v1295 = vld [vmem:[#allocation3 + $0x98] sm:$0xff]
        %v1296 = vld [vmem:[#allocation3 + $0xa0] sm:$0xff]
        %v1297 = vld [vmem:[#allocation3 + $0xa8] sm:$0xff]
        %v1298 = vld [vmem:[#allocation3 + $0xb0] sm:$0xff]
        %v1299 = vld [vmem:[#allocation3 + $0xb8] sm:$0xff]
        %v1300 = vld [vmem:[#allocation3 + $0xc0] sm:$0xff]
        %v1301 = vld [vmem:[#allocation3 + $0xc8] sm:$0xff]
        %v1302 = vld [vmem:[#allocation3 + $0xd0] sm:$0xff]
        %v1303 = vld [vmem:[#allocation3 + $0xd8] sm:$0xff]
        %v1304 = vld [vmem:[#allocation3 + $0xe0] sm:$0xff]
        %v1305 = vld [vmem:[#allocation3 + $0xe8] sm:$0xff]
        %v1306 = vld [vmem:[#allocation3 + $0xf0] sm:$0xff]
        %v1307 = vld [vmem:[#allocation3 + $0xf8] sm:$0xff]
        %v1308 = vpack.c.bf16 %v1245, %v1244
        %v1309 = vpack.c.bf16 %v1247, %v1246
        %v1310 = vpack.c.bf16 %v1249, %v1248
        %v1311 = vpack.c.bf16 %v1251, %v1250
        %v1312 = vpack.c.bf16 %v1253, %v1252
        %v1313 = vpack.c.bf16 %v1255, %v1254
        %v1314 = vpack.c.bf16 %v1257, %v1256
        %v1315 = vpack.c.bf16 %v1259, %v1258
        %v1316 = vpack.c.bf16 %v1261, %v1260
        %v1317 = vpack.c.bf16 %v1263, %v1262
        %v1318 = vpack.c.bf16 %v1265, %v1264
        %v1319 = vpack.c.bf16 %v1267, %v1266
        %v1320 = vpack.c.bf16 %v1269, %v1268
        %v1321 = vpack.c.bf16 %v1271, %v1270
        %v1322 = vpack.c.bf16 %v1273, %v1272
        %v1323 = vpack.c.bf16 %v1275, %v1274
        %1324 = vmatprep.subr.bf16.mxu0 0
        %1325 = vmatpush1.bf16.msra.mxu0 %v880
        %1326 = vmatprep.subr.bf16.mxu0 0
        %1327 = vmatpush1.bf16.msra.mxu0 %v881
        %1328 = vmatprep.subr.bf16.mxu0 0
        %1329 = vmatpush1.bf16.msra.mxu0 %v882
        %1330 = vmatprep.subr.bf16.mxu0 0
        %1331 = vmatpush1.bf16.msra.mxu0 %v883
        %1332 = vmatprep.subr.bf16.mxu0 0
        %1333 = vmatpush1.bf16.msra.mxu0 %v884
        %1334 = vmatprep.subr.bf16.mxu0 0
        %1335 = vmatpush1.bf16.msra.mxu0 %v885
        %1336 = vmatprep.subr.bf16.mxu0 0
        %1337 = vmatpush1.bf16.msra.mxu0 %v886
        %1338 = vmatprep.subr.bf16.mxu0 0
        %1339 = vmatpush1.bf16.msra.mxu0 %v887
        %1340 = vmatprep.subr.bf16.mxu0 0
        %1341 = vmatpush1.bf16.msra.mxu0 0
        %1342 = vmatprep.subr.bf16.mxu0 0
        %1343 = vmatpush1.bf16.msra.mxu0 0
        %1344 = vmatprep.subr.bf16.mxu0 0
        %1345 = vmatpush1.bf16.msra.mxu0 0
        %1346 = vmatprep.subr.bf16.mxu0 0
        %1347 = vmatpush1.bf16.msra.mxu0 0
        %1348 = vmatprep.subr.bf16.mxu0 0
        %1349 = vmatpush1.bf16.msra.mxu0 0
        %1350 = vmatprep.subr.bf16.mxu0 0
        %1351 = vmatpush1.bf16.msra.mxu0 0
        %1352 = vmatprep.subr.bf16.mxu0 0
        %1353 = vmatpush1.bf16.msra.mxu0 0
        %1354 = vmatprep.subr.bf16.mxu0 0
        %1355 = vmatpush1.bf16.msra.mxu0 0
        %1356 = vmatprep.mubr.bf16.mxu0 0
        %1357 = vmatmul.mubr.bf16.gmra.mrb[0].mxu0 %v1308
        %v1358 = vpop.f32.mrb[0].mxu0
        %v1359 = vadd.f32 0.0, %v1358
        %v1360 = vpop.f32.mrb[0].mxu0
        %v1361 = vpop.f32.mrb[0].mxu0
        %v1362 = vadd.f32 0.0, %v1361
        %v1363 = vpop.f32.mrb[0].mxu0
        %1364 = vmatprep.mubr.bf16.mxu0 0
        %1365 = vmatmul.mubr.bf16.gmra.mrb[0].mxu0 %v1309
        %v1366 = vpop.f32.mrb[0].mxu0
        %v1367 = vadd.f32 0.0, %v1366
        %v1368 = vpop.f32.mrb[0].mxu0
        %v1369 = vpop.f32.mrb[0].mxu0
        %v1370 = vadd.f32 0.0, %v1369
        %v1371 = vpop.f32.mrb[0].mxu0
        %1372 = vmatprep.mubr.bf16.mxu0 0
        %1373 = vmatmul.mubr.bf16.gmra.mrb[0].mxu0 %v1310
        %v1374 = vpop.f32.mrb[0].mxu0
        %v1375 = vadd.f32 0.0, %v1374
        %v1376 = vpop.f32.mrb[0].mxu0
        %v1377 = vpop.f32.mrb[0].mxu0
        %v1378 = vadd.f32 0.0, %v1377
        %v1379 = vpop.f32.mrb[0].mxu0
        %1380 = vmatprep.mubr.bf16.mxu0 0
        %1381 = vmatmul.mubr.bf16.gmra.mrb[0].mxu0 %v1311
        %v1382 = vpop.f32.mrb[0].mxu0
        %v1383 = vadd.f32 0.0, %v1382
        %v1384 = vpop.f32.mrb[0].mxu0
        %v1385 = vpop.f32.mrb[0].mxu0
        %v1386 = vadd.f32 0.0, %v1385
        %v1387 = vpop.f32.mrb[0].mxu0
        %1388 = vmatprep.mubr.bf16.mxu0 0
        %1389 = vmatmul.mubr.bf16.gmra.mrb[0].mxu0 %v1312
        %v1390 = vpop.f32.mrb[0].mxu0
        %v1391 = vadd.f32 0.0, %v1390
        %v1392 = vpop.f32.mrb[0].mxu0
        %v1393 = vpop.f32.mrb[0].mxu0
        %v1394 = vadd.f32 0.0, %v1393
        %v1395 = vpop.f32.mrb[0].mxu0
        %1396 = vmatprep.mubr.bf16.mxu0 0
        %1397 = vmatmul.mubr.bf16.gmra.mrb[0].mxu0 %v1313
        %v1398 = vpop.f32.mrb[0].mxu0
        %v1399 = vadd.f32 0.0, %v1398
        %v1400 = vpop.f32.mrb[0].mxu0
        %v1401 = vpop.f32.mrb[0].mxu0
        %v1402 = vadd.f32 0.0, %v1401
        %v1403 = vpop.f32.mrb[0].mxu0
        %1404 = vmatprep.mubr.bf16.mxu0 0
        %1405 = vmatmul.mubr.bf16.gmra.mrb[0].mxu0 %v1314
        %v1406 = vpop.f32.mrb[0].mxu0
        %v1407 = vadd.f32 0.0, %v1406
        %v1408 = vpop.f32.mrb[0].mxu0
        %v1409 = vpop.f32.mrb[0].mxu0
        %v1410 = vadd.f32 0.0, %v1409
        %v1411 = vpop.f32.mrb[0].mxu0
        %1412 = vmatprep.mubr.bf16.mxu0 0
        %1413 = vmatmul.mubr.bf16.gmra.mrb[0].mxu0 %v1315
        %v1414 = vpop.f32.mrb[0].mxu0
        %v1415 = vadd.f32 0.0, %v1414
        %v1416 = vpop.f32.mrb[0].mxu0
        %v1417 = vpop.f32.mrb[0].mxu0
        %v1418 = vadd.f32 0.0, %v1417
        %v1419 = vpop.f32.mrb[0].mxu0
        %1420 = vmatprep.mubr.bf16.mxu0 0
        %1421 = vmatmul.mubr.bf16.gmra.mrb[0].mxu0 %v1316
        %v1422 = vpop.f32.mrb[0].mxu0
        %v1423 = vadd.f32 0.0, %v1422
        %v1424 = vpop.f32.mrb[0].mxu0
        %v1425 = vpop.f32.mrb[0].mxu0
        %v1426 = vadd.f32 0.0, %v1425
        %v1427 = vpop.f32.mrb[0].mxu0
        %1428 = vmatprep.mubr.bf16.mxu0 0
        %1429 = vmatmul.mubr.bf16.gmra.mrb[0].mxu0 %v1317
        %v1430 = vpop.f32.mrb[0].mxu0
        %v1431 = vadd.f32 0.0, %v1430
        %v1432 = vpop.f32.mrb[0].mxu0
        %v1433 = vpop.f32.mrb[0].mxu0
        %v1434 = vadd.f32 0.0, %v1433
        %v1435 = vpop.f32.mrb[0].mxu0
        %1436 = vmatprep.mubr.bf16.mxu0 0
        %1437 = vmatmul.mubr.bf16.gmra.mrb[0].mxu0 %v1318
        %v1438 = vpop.f32.mrb[0].mxu0
        %v1439 = vadd.f32 0.0, %v1438
        %v1440 = vpop.f32.mrb[0].mxu0
        %v1441 = vpop.f32.mrb[0].mxu0
        %v1442 = vadd.f32 0.0, %v1441
        %v1443 = vpop.f32.mrb[0].mxu0
        %1444 = vmatprep.mubr.bf16.mxu0 0
        %1445 = vmatmul.mubr.bf16.gmra.mrb[0].mxu0 %v1319
        %v1446 = vpop.f32.mrb[0].mxu0
        %v1447 = vadd.f32 0.0, %v1446
        %v1448 = vpop.f32.mrb[0].mxu0
        %v1449 = vpop.f32.mrb[0].mxu0
        %v1450 = vadd.f32 0.0, %v1449
        %v1451 = vpop.f32.mrb[0].mxu0
        %1452 = vmatprep.mubr.bf16.mxu0 0
        %1453 = vmatmul.mubr.bf16.gmra.mrb[0].mxu0 %v1320
        %v1454 = vpop.f32.mrb[0].mxu0
        %v1455 = vadd.f32 0.0, %v1454
        %v1456 = vpop.f32.mrb[0].mxu0
        %v1457 = vpop.f32.mrb[0].mxu0
        %v1458 = vadd.f32 0.0, %v1457
        %v1459 = vpop.f32.mrb[0].mxu0
        %1460 = vmatprep.mubr.bf16.mxu0 0
        %1461 = vmatmul.mubr.bf16.gmra.mrb[0].mxu0 %v1321
        %v1462 = vpop.f32.mrb[0].mxu0
        %v1463 = vadd.f32 0.0, %v1462
        %v1464 = vpop.f32.mrb[0].mxu0
        %v1465 = vpop.f32.mrb[0].mxu0
        %v1466 = vadd.f32 0.0, %v1465
        %v1467 = vpop.f32.mrb[0].mxu0
        %1468 = vmatprep.mubr.bf16.mxu0 0
        %1469 = vmatmul.mubr.bf16.gmra.mrb[0].mxu0 %v1322
        %v1470 = vpop.f32.mrb[0].mxu0
        %v1471 = vadd.f32 0.0, %v1470
        %v1472 = vpop.f32.mrb[0].mxu0
        %v1473 = vpop.f32.mrb[0].mxu0
        %v1474 = vadd.f32 0.0, %v1473
        %v1475 = vpop.f32.mrb[0].mxu0
        %1476 = vmatprep.mubr.bf16.mxu0 0
        %1477 = vmatmul.mubr.bf16.gmra.mrb[0].mxu0 %v1323
        %v1478 = vpop.f32.mrb[0].mxu0
        %v1479 = vadd.f32 0.0, %v1478
        %v1480 = vpop.f32.mrb[0].mxu0
        %v1481 = vpop.f32.mrb[0].mxu0
        %v1482 = vadd.f32 0.0, %v1481
        %v1483 = vpop.f32.mrb[0].mxu0
        %1484 = vdwg.mxu0
        %v1485 = vadd.f32 %v1276, %v1359
        %v1486 = vadd.f32 %v1277, %v1362
        %v1487 = vadd.f32 %v1278, %v1367
        %v1488 = vadd.f32 %v1279, %v1370
        %v1489 = vadd.f32 %v1280, %v1375
        %v1490 = vadd.f32 %v1281, %v1378
        %v1491 = vadd.f32 %v1282, %v1383
        %v1492 = vadd.f32 %v1283, %v1386
        %v1493 = vadd.f32 %v1284, %v1391
        %v1494 = vadd.f32 %v1285, %v1394
        %v1495 = vadd.f32 %v1286, %v1399
        %v1496 = vadd.f32 %v1287, %v1402
        %v1497 = vadd.f32 %v1288, %v1407
        %v1498 = vadd.f32 %v1289, %v1410
        %v1499 = vadd.f32 %v1290, %v1415
        %v1500 = vadd.f32 %v1291, %v1418
        %v1501 = vadd.f32 %v1292, %v1423
        %v1502 = vadd.f32 %v1293, %v1426
        %v1503 = vadd.f32 %v1294, %v1431
        %v1504 = vadd.f32 %v1295, %v1434
        %v1505 = vadd.f32 %v1296, %v1439
        %v1506 = vadd.f32 %v1297, %v1442
        %v1507 = vadd.f32 %v1298, %v1447
        %v1508 = vadd.f32 %v1299, %v1450
        %v1509 = vadd.f32 %v1300, %v1455
        %v1510 = vadd.f32 %v1301, %v1458
        %v1511 = vadd.f32 %v1302, %v1463
        %v1512 = vadd.f32 %v1303, %v1466
        %v1513 = vadd.f32 %v1304, %v1471
        %v1514 = vadd.f32 %v1305, %v1474
        %v1515 = vadd.f32 %v1306, %v1479
        %v1516 = vadd.f32 %v1307, %v1482
        %1517 = vst [vmem:[#allocation3] sm:$0xff] %v1485
        %1518 = vst [vmem:[#allocation3 + $0x8] sm:$0xff] %v1486
        %1519 = vst [vmem:[#allocation3 + $0x10] sm:$0xff] %v1487
        %1520 = vst [vmem:[#allocation3 + $0x18] sm:$0xff] %v1488
        %1521 = vst [vmem:[#allocation3 + $0x20] sm:$0xff] %v1489
        %1522 = vst [vmem:[#allocation3 + $0x28] sm:$0xff] %v1490
        %1523 = vst [vmem:[#allocation3 + $0x30] sm:$0xff] %v1491
        %1524 = vst [vmem:[#allocation3 + $0x38] sm:$0xff] %v1492
        %1525 = vst [vmem:[#allocation3 + $0x40] sm:$0xff] %v1493
        %1526 = vst [vmem:[#allocation3 + $0x48] sm:$0xff] %v1494
        %1527 = vst [vmem:[#allocation3 + $0x50] sm:$0xff] %v1495
        %1528 = vst [vmem:[#allocation3 + $0x58] sm:$0xff] %v1496
        %1529 = vst [vmem:[#allocation3 + $0x60] sm:$0xff] %v1497
        %1530 = vst [vmem:[#allocation3 + $0x68] sm:$0xff] %v1498
        %1531 = vst [vmem:[#allocation3 + $0x70] sm:$0xff] %v1499
        %1532 = vst [vmem:[#allocation3 + $0x78] sm:$0xff] %v1500
        %1533 = vst [vmem:[#allocation3 + $0x80] sm:$0xff] %v1501
        %1534 = vst [vmem:[#allocation3 + $0x88] sm:$0xff] %v1502
        %1535 = vst [vmem:[#allocation3 + $0x90] sm:$0xff] %v1503
        %1536 = vst [vmem:[#allocation3 + $0x98] sm:$0xff] %v1504
        %1537 = vst [vmem:[#allocation3 + $0xa0] sm:$0xff] %v1505
        %1538 = vst [vmem:[#allocation3 + $0xa8] sm:$0xff] %v1506
        %1539 = vst [vmem:[#allocation3 + $0xb0] sm:$0xff] %v1507
        %1540 = vst [vmem:[#allocation3 + $0xb8] sm:$0xff] %v1508
        %1541 = vst [vmem:[#allocation3 + $0xc0] sm:$0xff] %v1509
        %1542 = vst [vmem:[#allocation3 + $0xc8] sm:$0xff] %v1510
        %1543 = vst [vmem:[#allocation3 + $0xd0] sm:$0xff] %v1511
        %1544 = vst [vmem:[#allocation3 + $0xd8] sm:$0xff] %v1512
        %1545 = vst [vmem:[#allocation3 + $0xe0] sm:$0xff] %v1513
        %1546 = vst [vmem:[#allocation3 + $0xe8] sm:$0xff] %v1514
        %1547 = vst [vmem:[#allocation3 + $0xf0] sm:$0xff] %v1515
        %1548 = vst [vmem:[#allocation3 + $0xf8] sm:$0xff] %v1516
        %p1549 = scmp.eq.s32.totalorder %s28, 1
        // Predicated region
        $region57: #{tpu_custom_call.1} parent=39 // pred_check
          %p1550 = pneg %p1549
        $region58: #{tpu_custom_call.1} parent=39 // pred_check_branch
          %1552 = sbr.rel (%p1550) target = $region60
        $region59: #{tpu_custom_call.1} parent=39 // pred_region
          %v1553 = vld [vmem:[#allocation3] sm:$0xff]
          %v1554 = vld [vmem:[#allocation3 + $0x8] sm:$0xff]
          %v1555 = vld [vmem:[#allocation3 + $0x10] sm:$0xff]
          %v1556 = vld [vmem:[#allocation3 + $0x18] sm:$0xff]
          %v1557 = vld [vmem:[#allocation3 + $0x20] sm:$0xff]
          %v1558 = vld [vmem:[#allocation3 + $0x28] sm:$0xff]
          %v1559 = vld [vmem:[#allocation3 + $0x30] sm:$0xff]
          %v1560 = vld [vmem:[#allocation3 + $0x38] sm:$0xff]
          %v1561 = vld [vmem:[#allocation3 + $0x40] sm:$0xff]
          %v1562 = vld [vmem:[#allocation3 + $0x48] sm:$0xff]
          %v1563 = vld [vmem:[#allocation3 + $0x50] sm:$0xff]
          %v1564 = vld [vmem:[#allocation3 + $0x58] sm:$0xff]
          %v1565 = vld [vmem:[#allocation3 + $0x60] sm:$0xff]
          %v1566 = vld [vmem:[#allocation3 + $0x68] sm:$0xff]
          %v1567 = vld [vmem:[#allocation3 + $0x70] sm:$0xff]
          %v1568 = vld [vmem:[#allocation3 + $0x78] sm:$0xff]
          %v1569 = vld [vmem:[#allocation3 + $0x80] sm:$0xff]
          %v1570 = vld [vmem:[#allocation3 + $0x88] sm:$0xff]
          %v1571 = vld [vmem:[#allocation3 + $0x90] sm:$0xff]
          %v1572 = vld [vmem:[#allocation3 + $0x98] sm:$0xff]
          %v1573 = vld [vmem:[#allocation3 + $0xa0] sm:$0xff]
          %v1574 = vld [vmem:[#allocation3 + $0xa8] sm:$0xff]
          %v1575 = vld [vmem:[#allocation3 + $0xb0] sm:$0xff]
          %v1576 = vld [vmem:[#allocation3 + $0xb8] sm:$0xff]
          %v1577 = vld [vmem:[#allocation3 + $0xc0] sm:$0xff]
          %v1578 = vld [vmem:[#allocation3 + $0xc8] sm:$0xff]
          %v1579 = vld [vmem:[#allocation3 + $0xd0] sm:$0xff]
          %v1580 = vld [vmem:[#allocation3 + $0xd8] sm:$0xff]
          %v1581 = vld [vmem:[#allocation3 + $0xe0] sm:$0xff]
          %v1582 = vld [vmem:[#allocation3 + $0xe8] sm:$0xff]
          %v1583 = vld [vmem:[#allocation3 + $0xf0] sm:$0xff]
          %v1584 = vld [vmem:[#allocation3 + $0xf8] sm:$0xff]
          %v1585 = vpack.c.bf16 %v1554, %v1553
          %v1586 = vpack.c.bf16 %v1556, %v1555
          %v1587 = vpack.c.bf16 %v1558, %v1557
          %v1588 = vpack.c.bf16 %v1560, %v1559
          %v1589 = vpack.c.bf16 %v1562, %v1561
          %v1590 = vpack.c.bf16 %v1564, %v1563
          %v1591 = vpack.c.bf16 %v1566, %v1565
          %v1592 = vpack.c.bf16 %v1568, %v1567
          %v1593 = vpack.c.bf16 %v1570, %v1569
          %v1594 = vpack.c.bf16 %v1572, %v1571
          %v1595 = vpack.c.bf16 %v1574, %v1573
          %v1596 = vpack.c.bf16 %v1576, %v1575
          %v1597 = vpack.c.bf16 %v1578, %v1577
          %v1598 = vpack.c.bf16 %v1580, %v1579
          %v1599 = vpack.c.bf16 %v1582, %v1581
          %v1600 = vpack.c.bf16 %v1584, %v1583
          %v1601 = vld [vmem:[#allocation9] sm:$0xf]
          %v1602 = vld [vmem:[#allocation9 + $0x4] sm:$0xf]
          %v1603 = vld [vmem:[#allocation9 + $0x8] sm:$0xf]
          %v1604 = vld [vmem:[#allocation9 + $0xc] sm:$0xf]
          %v1605 = vld [vmem:[#allocation9 + $0x10] sm:$0xf]
          %v1606 = vld [vmem:[#allocation9 + $0x14] sm:$0xf]
          %v1607 = vld [vmem:[#allocation9 + $0x18] sm:$0xf]
          %v1608 = vld [vmem:[#allocation9 + $0x1c] sm:$0xf]
          %v1609 = vld [vmem:[#allocation9 + $0x20] sm:$0xf]
          %v1610 = vld [vmem:[#allocation9 + $0x24] sm:$0xf]
          %v1611 = vld [vmem:[#allocation9 + $0x28] sm:$0xf]
          %v1612 = vld [vmem:[#allocation9 + $0x2c] sm:$0xf]
          %v1613 = vld [vmem:[#allocation9 + $0x30] sm:$0xf]
          %v1614 = vld [vmem:[#allocation9 + $0x34] sm:$0xf]
          %v1615 = vld [vmem:[#allocation9 + $0x38] sm:$0xf]
          %v1616 = vld [vmem:[#allocation9 + $0x3c] sm:$0xf]
          %v1617 = vld [vmem:[%s4] sm:$0x1]
          %v1619 = vlaneseq
          %v1620 = vshrl.u32 %v1619, 7
          %v1621 = vsub.s32 0, %v1620
          %v1622 = vrot.slane %v1617, %v1621
          %v1640 = vunpack.c.l.b16 %v1601
          %v1641 = vunpack.c.l.b16 %v1602
          %v1642 = vunpack.c.l.b16 %v1603
          %v1643 = vunpack.c.l.b16 %v1604
          %v1644 = vunpack.c.l.b16 %v1605
          %v1645 = vunpack.c.l.b16 %v1606
          %v1646 = vunpack.c.l.b16 %v1607
          %v1647 = vunpack.c.l.b16 %v1608
          %v1648 = vunpack.c.l.b16 %v1609
          %v1649 = vunpack.c.l.b16 %v1610
          %v1650 = vunpack.c.l.b16 %v1611
          %v1651 = vunpack.c.l.b16 %v1612
          %v1652 = vunpack.c.l.b16 %v1613
          %v1653 = vunpack.c.l.b16 %v1614
          %v1654 = vunpack.c.l.b16 %v1615
          %v1655 = vunpack.c.l.b16 %v1616
          %v1656 = vpack.c.b16 %v1641, %v1640
          %v1657 = vpack.c.b16 %v1643, %v1642
          %v1658 = vpack.c.b16 %v1645, %v1644
          %v1659 = vpack.c.b16 %v1647, %v1646
          %v1660 = vpack.c.b16 %v1649, %v1648
          %v1661 = vpack.c.b16 %v1651, %v1650
          %v1662 = vpack.c.b16 %v1653, %v1652
          %v1663 = vpack.c.b16 %v1655, %v1654
          %1672 = vmatprep.subr.bf16.mxu0 0
          %1673 = vmatpush1.bf16.msra.mxu0 %v1656
          %1674 = vmatprep.subr.bf16.mxu0 0
          %1675 = vmatpush1.bf16.msra.mxu0 %v1657
          %1676 = vmatprep.subr.bf16.mxu0 0
          %1677 = vmatpush1.bf16.msra.mxu0 %v1658
          %1678 = vmatprep.subr.bf16.mxu0 0
          %1679 = vmatpush1.bf16.msra.mxu0 %v1659
          %1680 = vmatprep.subr.bf16.mxu0 0
          %1681 = vmatpush1.bf16.msra.mxu0 %v1660
          %1682 = vmatprep.subr.bf16.mxu0 0
          %1683 = vmatpush1.bf16.msra.mxu0 %v1661
          %1684 = vmatprep.subr.bf16.mxu0 0
          %1685 = vmatpush1.bf16.msra.mxu0 %v1662
          %1686 = vmatprep.subr.bf16.mxu0 0
          %1687 = vmatpush1.bf16.msra.mxu0 %v1663
          %1688 = vmatprep.subr.bf16.mxu0 0
          %1689 = vmatpush1.bf16.msra.mxu0 0
          %1690 = vmatprep.subr.bf16.mxu0 0
          %1691 = vmatpush1.bf16.msra.mxu0 0
          %1692 = vmatprep.subr.bf16.mxu0 0
          %1693 = vmatpush1.bf16.msra.mxu0 0
          %1694 = vmatprep.subr.bf16.mxu0 0
          %1695 = vmatpush1.bf16.msra.mxu0 0
          %1696 = vmatprep.subr.bf16.mxu0 0
          %1697 = vmatpush1.bf16.msra.mxu0 0
          %1698 = vmatprep.subr.bf16.mxu0 0
          %1699 = vmatpush1.bf16.msra.mxu0 0
          %1700 = vmatprep.subr.bf16.mxu0 0
          %1701 = vmatpush1.bf16.msra.mxu0 0
          %1702 = vmatprep.subr.bf16.mxu0 0
          %1703 = vmatpush1.bf16.msra.mxu0 0
          %1704 = vmatprep.mubr.bf16.mxu0 0
          %1705 = vmatmul.mubr.bf16.gmra.mrb[0].mxu0 %v1585
          %v1706 = vpop.f32.mrb[0].mxu0
          %v1707 = vadd.f32 %v1622, %v1706
          %v1708 = vpop.f32.mrb[0].mxu0
          %v1709 = vpop.f32.mrb[0].mxu0
          %v1710 = vadd.f32 %v1622, %v1709
          %v1711 = vpop.f32.mrb[0].mxu0
          %1712 = vmatprep.mubr.bf16.mxu0 0
          %1713 = vmatmul.mubr.bf16.gmra.mrb[0].mxu0 %v1586
          %v1714 = vpop.f32.mrb[0].mxu0
          %v1715 = vadd.f32 %v1622, %v1714
          %v1716 = vpop.f32.mrb[0].mxu0
          %v1717 = vpop.f32.mrb[0].mxu0
          %v1718 = vadd.f32 %v1622, %v1717
          %v1719 = vpop.f32.mrb[0].mxu0
          %1720 = vmatprep.mubr.bf16.mxu0 0
          %1721 = vmatmul.mubr.bf16.gmra.mrb[0].mxu0 %v1587
          %v1722 = vpop.f32.mrb[0].mxu0
          %v1723 = vadd.f32 %v1622, %v1722
          %v1724 = vpop.f32.mrb[0].mxu0
          %v1725 = vpop.f32.mrb[0].mxu0
          %v1726 = vadd.f32 %v1622, %v1725
          %v1727 = vpop.f32.mrb[0].mxu0
          %1728 = vmatprep.mubr.bf16.mxu0 0
          %1729 = vmatmul.mubr.bf16.gmra.mrb[0].mxu0 %v1588
          %v1730 = vpop.f32.mrb[0].mxu0
          %v1731 = vadd.f32 %v1622, %v1730
          %v1732 = vpop.f32.mrb[0].mxu0
          %v1733 = vpop.f32.mrb[0].mxu0
          %v1734 = vadd.f32 %v1622, %v1733
          %v1735 = vpop.f32.mrb[0].mxu0
          %1736 = vmatprep.mubr.bf16.mxu0 0
          %1737 = vmatmul.mubr.bf16.gmra.mrb[0].mxu0 %v1589
          %v1738 = vpop.f32.mrb[0].mxu0
          %v1739 = vadd.f32 %v1622, %v1738
          %v1740 = vpop.f32.mrb[0].mxu0
          %v1741 = vpop.f32.mrb[0].mxu0
          %v1742 = vadd.f32 %v1622, %v1741
          %v1743 = vpop.f32.mrb[0].mxu0
          %1744 = vmatprep.mubr.bf16.mxu0 0
          %1745 = vmatmul.mubr.bf16.gmra.mrb[0].mxu0 %v1590
          %v1746 = vpop.f32.mrb[0].mxu0
          %v1747 = vadd.f32 %v1622, %v1746
          %v1748 = vpop.f32.mrb[0].mxu0
          %v1749 = vpop.f32.mrb[0].mxu0
          %v1750 = vadd.f32 %v1622, %v1749
          %v1751 = vpop.f32.mrb[0].mxu0
          %1752 = vmatprep.mubr.bf16.mxu0 0
          %1753 = vmatmul.mubr.bf16.gmra.mrb[0].mxu0 %v1591
          %v1754 = vpop.f32.mrb[0].mxu0
          %v1755 = vadd.f32 %v1622, %v1754
          %v1756 = vpop.f32.mrb[0].mxu0
          %v1757 = vpop.f32.mrb[0].mxu0
          %v1758 = vadd.f32 %v1622, %v1757
          %v1759 = vpop.f32.mrb[0].mxu0
          %1760 = vmatprep.mubr.bf16.mxu0 0
          %1761 = vmatmul.mubr.bf16.gmra.mrb[0].mxu0 %v1592
          %v1762 = vpop.f32.mrb[0].mxu0
          %v1763 = vadd.f32 %v1622, %v1762
          %v1764 = vpop.f32.mrb[0].mxu0
          %v1765 = vpop.f32.mrb[0].mxu0
          %v1766 = vadd.f32 %v1622, %v1765
          %v1767 = vpop.f32.mrb[0].mxu0
          %1768 = vmatprep.mubr.bf16.mxu0 0
          %1769 = vmatmul.mubr.bf16.gmra.mrb[0].mxu0 %v1593
          %v1770 = vpop.f32.mrb[0].mxu0
          %v1771 = vadd.f32 %v1622, %v1770
          %v1772 = vpop.f32.mrb[0].mxu0
          %v1773 = vpop.f32.mrb[0].mxu0
          %v1774 = vadd.f32 %v1622, %v1773
          %v1775 = vpop.f32.mrb[0].mxu0
          %1776 = vmatprep.mubr.bf16.mxu0 0
          %1777 = vmatmul.mubr.bf16.gmra.mrb[0].mxu0 %v1594
          %v1778 = vpop.f32.mrb[0].mxu0
          %v1779 = vadd.f32 %v1622, %v1778
          %v1780 = vpop.f32.mrb[0].mxu0
          %v1781 = vpop.f32.mrb[0].mxu0
          %v1782 = vadd.f32 %v1622, %v1781
          %v1783 = vpop.f32.mrb[0].mxu0
          %1784 = vmatprep.mubr.bf16.mxu0 0
          %1785 = vmatmul.mubr.bf16.gmra.mrb[0].mxu0 %v1595
          %v1786 = vpop.f32.mrb[0].mxu0
          %v1787 = vadd.f32 %v1622, %v1786
          %v1788 = vpop.f32.mrb[0].mxu0
          %v1789 = vpop.f32.mrb[0].mxu0
          %v1790 = vadd.f32 %v1622, %v1789
          %v1791 = vpop.f32.mrb[0].mxu0
          %1792 = vmatprep.mubr.bf16.mxu0 0
          %1793 = vmatmul.mubr.bf16.gmra.mrb[0].mxu0 %v1596
          %v1794 = vpop.f32.mrb[0].mxu0
          %v1795 = vadd.f32 %v1622, %v1794
          %v1796 = vpop.f32.mrb[0].mxu0
          %v1797 = vpop.f32.mrb[0].mxu0
          %v1798 = vadd.f32 %v1622, %v1797
          %v1799 = vpop.f32.mrb[0].mxu0
          %1800 = vmatprep.mubr.bf16.mxu0 0
          %1801 = vmatmul.mubr.bf16.gmra.mrb[0].mxu0 %v1597
          %v1802 = vpop.f32.mrb[0].mxu0
          %v1803 = vadd.f32 %v1622, %v1802
          %v1804 = vpop.f32.mrb[0].mxu0
          %v1805 = vpop.f32.mrb[0].mxu0
          %v1806 = vadd.f32 %v1622, %v1805
          %v1807 = vpop.f32.mrb[0].mxu0
          %1808 = vmatprep.mubr.bf16.mxu0 0
          %1809 = vmatmul.mubr.bf16.gmra.mrb[0].mxu0 %v1598
          %v1810 = vpop.f32.mrb[0].mxu0
          %v1811 = vadd.f32 %v1622, %v1810
          %v1812 = vpop.f32.mrb[0].mxu0
          %v1813 = vpop.f32.mrb[0].mxu0
          %v1814 = vadd.f32 %v1622, %v1813
          %v1815 = vpop.f32.mrb[0].mxu0
          %1816 = vmatprep.mubr.bf16.mxu0 0
          %1817 = vmatmul.mubr.bf16.gmra.mrb[0].mxu0 %v1599
          %v1818 = vpop.f32.mrb[0].mxu0
          %v1819 = vadd.f32 %v1622, %v1818
          %v1820 = vpop.f32.mrb[0].mxu0
          %v1821 = vpop.f32.mrb[0].mxu0
          %v1822 = vadd.f32 %v1622, %v1821
          %v1823 = vpop.f32.mrb[0].mxu0
          %1824 = vmatprep.mubr.bf16.mxu0 0
          %1825 = vmatmul.mubr.bf16.gmra.mrb[0].mxu0 %v1600
          %v1826 = vpop.f32.mrb[0].mxu0
          %v1827 = vadd.f32 %v1622, %v1826
          %v1828 = vpop.f32.mrb[0].mxu0
          %v1829 = vpop.f32.mrb[0].mxu0
          %v1830 = vadd.f32 %v1622, %v1829
          %v1831 = vpop.f32.mrb[0].mxu0
          %1832 = vdwg.mxu0
          %v1833 = vld [vmem:[%s249] sm:$0xff]
          %v1834 = vld [vmem:[%s249 + $0x8] sm:$0xff]
          %v1835 = vld [vmem:[%s249 + $0x10] sm:$0xff]
          %v1836 = vld [vmem:[%s249 + $0x18] sm:$0xff]
          %v1837 = vld [vmem:[%s249 + $0x20] sm:$0xff]
          %v1838 = vld [vmem:[%s249 + $0x28] sm:$0xff]
          %v1839 = vld [vmem:[%s249 + $0x30] sm:$0xff]
          %v1840 = vld [vmem:[%s249 + $0x38] sm:$0xff]
          %v1841 = vld [vmem:[%s249 + $0x40] sm:$0xff]
          %v1842 = vld [vmem:[%s249 + $0x48] sm:$0xff]
          %v1843 = vld [vmem:[%s249 + $0x50] sm:$0xff]
          %v1844 = vld [vmem:[%s249 + $0x58] sm:$0xff]
          %v1845 = vld [vmem:[%s249 + $0x60] sm:$0xff]
          %v1846 = vld [vmem:[%s249 + $0x68] sm:$0xff]
          %v1847 = vld [vmem:[%s249 + $0x70] sm:$0xff]
          %v1848 = vld [vmem:[%s249 + $0x78] sm:$0xff]
          %v1849 = vld [vmem:[%s249 + $0x80] sm:$0xff]
          %v1850 = vld [vmem:[%s249 + $0x88] sm:$0xff]
          %v1851 = vld [vmem:[%s249 + $0x90] sm:$0xff]
          %v1852 = vld [vmem:[%s249 + $0x98] sm:$0xff]
          %v1853 = vld [vmem:[%s249 + $0xa0] sm:$0xff]
          %v1854 = vld [vmem:[%s249 + $0xa8] sm:$0xff]
          %v1855 = vld [vmem:[%s249 + $0xb0] sm:$0xff]
          %v1856 = vld [vmem:[%s249 + $0xb8] sm:$0xff]
          %v1857 = vld [vmem:[%s249 + $0xc0] sm:$0xff]
          %v1858 = vld [vmem:[%s249 + $0xc8] sm:$0xff]
          %v1859 = vld [vmem:[%s249 + $0xd0] sm:$0xff]
          %v1860 = vld [vmem:[%s249 + $0xd8] sm:$0xff]
          %v1861 = vld [vmem:[%s249 + $0xe0] sm:$0xff]
          %v1862 = vld [vmem:[%s249 + $0xe8] sm:$0xff]
          %v1863 = vld [vmem:[%s249 + $0xf0] sm:$0xff]
          %v1864 = vld [vmem:[%s249 + $0xf8] sm:$0xff]
          %v1865 = vadd.f32 %v1707, %v1833
          %v1866 = vadd.f32 %v1710, %v1834
          %v1867 = vadd.f32 %v1715, %v1835
          %v1868 = vadd.f32 %v1718, %v1836
          %v1869 = vadd.f32 %v1723, %v1837
          %v1870 = vadd.f32 %v1726, %v1838
          %v1871 = vadd.f32 %v1731, %v1839
          %v1872 = vadd.f32 %v1734, %v1840
          %v1873 = vadd.f32 %v1739, %v1841
          %v1874 = vadd.f32 %v1742, %v1842
          %v1875 = vadd.f32 %v1747, %v1843
          %v1876 = vadd.f32 %v1750, %v1844
          %v1877 = vadd.f32 %v1755, %v1845
          %v1878 = vadd.f32 %v1758, %v1846
          %v1879 = vadd.f32 %v1763, %v1847
          %v1880 = vadd.f32 %v1766, %v1848
          %v1881 = vadd.f32 %v1771, %v1849
          %v1882 = vadd.f32 %v1774, %v1850
          %v1883 = vadd.f32 %v1779, %v1851
          %v1884 = vadd.f32 %v1782, %v1852
          %v1885 = vadd.f32 %v1787, %v1853
          %v1886 = vadd.f32 %v1790, %v1854
          %v1887 = vadd.f32 %v1795, %v1855
          %v1888 = vadd.f32 %v1798, %v1856
          %v1889 = vadd.f32 %v1803, %v1857
          %v1890 = vadd.f32 %v1806, %v1858
          %v1891 = vadd.f32 %v1811, %v1859
          %v1892 = vadd.f32 %v1814, %v1860
          %v1893 = vadd.f32 %v1819, %v1861
          %v1894 = vadd.f32 %v1822, %v1862
          %v1895 = vadd.f32 %v1827, %v1863
          %v1896 = vadd.f32 %v1830, %v1864
          %1897 = vst [vmem:[%s283] sm:$0xff] %v1865
          %1898 = vst [vmem:[%s283 + $0x8] sm:$0xff] %v1866
          %1899 = vst [vmem:[%s283 + $0x10] sm:$0xff] %v1867
          %1900 = vst [vmem:[%s283 + $0x18] sm:$0xff] %v1868
          %1901 = vst [vmem:[%s283 + $0x20] sm:$0xff] %v1869
          %1902 = vst [vmem:[%s283 + $0x28] sm:$0xff] %v1870
          %1903 = vst [vmem:[%s283 + $0x30] sm:$0xff] %v1871
          %1904 = vst [vmem:[%s283 + $0x38] sm:$0xff] %v1872
          %1905 = vst [vmem:[%s283 + $0x40] sm:$0xff] %v1873
          %1906 = vst [vmem:[%s283 + $0x48] sm:$0xff] %v1874
          %1907 = vst [vmem:[%s283 + $0x50] sm:$0xff] %v1875
          %1908 = vst [vmem:[%s283 + $0x58] sm:$0xff] %v1876
          %1909 = vst [vmem:[%s283 + $0x60] sm:$0xff] %v1877
          %1910 = vst [vmem:[%s283 + $0x68] sm:$0xff] %v1878
          %1911 = vst [vmem:[%s283 + $0x70] sm:$0xff] %v1879
          %1912 = vst [vmem:[%s283 + $0x78] sm:$0xff] %v1880
          %1913 = vst [vmem:[%s283 + $0x80] sm:$0xff] %v1881
          %1914 = vst [vmem:[%s283 + $0x88] sm:$0xff] %v1882
          %1915 = vst [vmem:[%s283 + $0x90] sm:$0xff] %v1883
          %1916 = vst [vmem:[%s283 + $0x98] sm:$0xff] %v1884
          %1917 = vst [vmem:[%s283 + $0xa0] sm:$0xff] %v1885
          %1918 = vst [vmem:[%s283 + $0xa8] sm:$0xff] %v1886
          %1919 = vst [vmem:[%s283 + $0xb0] sm:$0xff] %v1887
          %1920 = vst [vmem:[%s283 + $0xb8] sm:$0xff] %v1888
          %1921 = vst [vmem:[%s283 + $0xc0] sm:$0xff] %v1889
          %1922 = vst [vmem:[%s283 + $0xc8] sm:$0xff] %v1890
          %1923 = vst [vmem:[%s283 + $0xd0] sm:$0xff] %v1891
          %1924 = vst [vmem:[%s283 + $0xd8] sm:$0xff] %v1892
          %1925 = vst [vmem:[%s283 + $0xe0] sm:$0xff] %v1893
          %1926 = vst [vmem:[%s283 + $0xe8] sm:$0xff] %v1894
          %1927 = vst [vmem:[%s283 + $0xf0] sm:$0xff] %v1895
          %1928 = vst [vmem:[%s283 + $0xf8] sm:$0xff] %v1896
        $region60: #{tpu_custom_call.1} parent=39 // pred_fallthru
          _
        %s1929 = sand.u32 %s153, 1
        %s1930 = scalar_lea.sflag [#allocation6], %s1929
        %s1931 = sand.u32 %s153, 1
        %s1932 = smul.addr %s1931, 256
        %s1933 = scalar_lea.vmem [#allocation10], %s1932
        // Predicated region
        $region61: #{tpu_custom_call.1} parent=39 // pred_check
          %p1934 = pneg %p163
        $region62: #{tpu_custom_call.1} parent=39 // pred_check_branch
          %1936 = sbr.rel (%p1934) target = $region64
        $region63: #{tpu_custom_call.1} parent=39 // pred_region
          %s1938 = ssub.s32 4096, 4096
          %1939 = vsyncadd %s1930, %s1938
          %s1940 = smul.addr %s27, 32
          %s1941 = smul.addr %s1940, 128
          %s1942 = scalar_lea.hbm %s5, %s1941
          %s1943 = sshll.u32 %s1933, 4
          %s1944 = int_to_ptr.vmem [resolvable:$true] %s1943
          %1949 = dma.vmem_to_hbm [thread:$0]  %s1944, 4096, %s1942, %s1930, 128, 128, 8
        $region64: #{tpu_custom_call.1} parent=39 // pred_fallthru
          _
      $region40: #{tpu_custom_call.1} parent=5 // pred_fallthru
        _
      %p1950 = scmp.le.s32.totalorder 2, %s18
      // Predicated region
      $region65: #{tpu_custom_call.1} parent=5 // pred_check
        %p1951 = pneg %p1950
      $region66: #{tpu_custom_call.1} parent=5 // pred_check_branch
        %1953 = sbr.rel (%p1951) target = $region68
      $region67: #{tpu_custom_call.1} parent=5 // pred_region
        %s1954 = ssub.s32 %s18, 2
        // Predicated region
        $region69: #{tpu_custom_call.1} parent=67 // pred_check
          %p1955 = pneg %p169
        $region70: #{tpu_custom_call.1} parent=67 // pred_check_branch
          %1957 = sbr.rel (%p1955) target = $region72
        $region71: #{tpu_custom_call.1} parent=67 // pred_region
          %s1958 = sand.u32 %s154, 1
          %s1959 = scalar_lea.sflag [#allocation6], %s1958
          %s1960 = sand.u32 %s154, 1
          %s1961 = smul.addr %s1960, 256
          %s1962 = scalar_lea.vmem [#allocation10], %s1961
          %1963 = dma.done %s1959, 4096
        $region72: #{tpu_custom_call.1} parent=67 // pred_fallthru
          _
      $region68: #{tpu_custom_call.1} parent=5 // pred_fallthru
        _
    $region6: #{tpu_custom_call.1} parent=1 // loop_footer
      %s22 = sadd.s32 1, %s18
    $region7: #{tpu_custom_call.1} parent=1 // loop_footer_branch
      %17 = sbr.rel target = $region3
    $region8: #{tpu_custom_call.1} parent=1 // loop_exit
      _
    %1964 = vsyncpa [#allocation5], 1
    %s1965 = scalar_lea.sflag [#allocation5], 1
    %1966 = vsyncpa %s1965, 1
    %1967 = vsyncpa [#allocation8], 1
    %1968 = vsyncpa [#allocation6], 1
    %s1969 = scalar_lea.sflag [#allocation6], 1
    %1970 = vsyncpa %s1969, 1

</llo_original>
